<compile_context>
chip_gen: v7x
topology: tpu7x:2x2x1
jax: 0.10.0
libtpu: 0.0.40
codegen_flags: <defaults>
</compile_context>

<pallas_src>
import functools

import jax
import jax.numpy as jnp
from jax.experimental import pallas as pl
from jax.experimental.pallas import tpu as pltpu


# ----------------------------- Pallas kernel ---------------------------------
def pcure_kernel(x_ref, w1_ref, b1_ref, w2_ref, b2_ref, o_ref, *, k, pad):
    """PatchCURE forward for one block of BN images.

    x_ref : (BN, H+2p, W+2p, C_in)  f32 zero-padded NHWC activations
    w1_ref: (K*K*C_in, C_out)       bf16 conv weights flattened (dy, dx, c)
    b1_ref: (1, C_out)              f32
    w2_ref: (C_out, CPAD)           bf16 head weights, 1/HW pooling scale
                                    folded in, classes zero-padded to 128 lanes
    b2_ref: (1, CPAD)               f32
    o_ref : (BN, CPAD)              f32 lane-dense logits
    """
    bn, hp, wp, c_in = x_ref.shape
    h = hp - 2 * pad
    w = wp - 2 * pad
    hw = h * w
    c_out = w1_ref.shape[1]

    # --- srf: in-kernel im2col (nine static shifted views) + single matmul ---
    x = x_ref[...]
    cols = [x[:, dy:dy + h, dx:dx + w, :]
            for dy in range(k) for dx in range(k)]
    patches = jnp.concatenate(cols, axis=-1)                 # (BN,H,W,K*K*C)
    patches = patches.reshape(bn * hw, k * k * c_in).astype(jnp.bfloat16)

    a = jnp.dot(patches, w1_ref[...], preferred_element_type=jnp.float32)
    a = jnp.maximum(a + b1_ref[...], 0.0)                    # (BN*HW, C_out)

    # --- lrf: global average pool (1/HW folded into w2) + linear head -------
    pooled = jnp.sum(a.reshape(bn, hw, c_out), axis=1)       # (BN, C_out) f32
    logits = jnp.dot(pooled.astype(jnp.bfloat16), w2_ref[...],
                     preferred_element_type=jnp.float32) + b2_ref[...]
    o_ref[...] = logits.astype(o_ref.dtype)                  # lane-dense store


# ------------------------------- glue / wrapper -------------------------------
@functools.partial(jax.jit, static_argnames=("k", "pad", "bn"))
def patchcure_forward(x_nchw, w1, b1, w2, b2, *, k=3, pad=1, bn=None):
    n, c_in, h, w = x_nchw.shape
    hw = h * w
    c_out = w1.shape[1]
    num_classes = w2.shape[1]
    cpad = ((num_classes + 127) // 128) * 128                # lane-dense pad

    # Single grid step with the full batch by default (see header comment).
    if bn is None:
        bn = n
    assert n % bn == 0, "batch must be divisible by per-step block size"
    num_blocks = n // bn

    # Zero-pad the 1-pixel halo once; the 9x patch expansion happens in VMEM
    # inside the kernel instead of in HBM.
    x_nhwc = jnp.transpose(x_nchw, (0, 2, 3, 1))             # NHWC
    x_pad = jnp.pad(x_nhwc, ((0, 0), (pad, pad), (pad, pad), (0, 0)))
    x_pad = x_pad.astype(jnp.float32)
    hp, wp = h + 2 * pad, w + 2 * pad

    w1_bf = w1.astype(jnp.bfloat16)
    b1_2d = b1.reshape(1, c_out).astype(jnp.float32)
    # Fold the 1/HW pooling scale into the head weights and pad the class dim
    # to a full 128-lane slab (sliced back after the call).
    w2_p = jnp.zeros((c_out, cpad), jnp.float32).at[:, :num_classes].set(w2 / hw)
    w2_p = w2_p.astype(jnp.bfloat16)
    b2_p = jnp.zeros((1, cpad), jnp.float32).at[0, :num_classes].set(b2)

    kernel = functools.partial(pcure_kernel, k=k, pad=pad)

    out = pl.pallas_call(
        kernel,
        out_shape=jax.ShapeDtypeStruct((num_blocks * bn, cpad), jnp.float32),
        grid_spec=pltpu.PrefetchScalarGridSpec(
            num_scalar_prefetch=0,
            grid=(num_blocks,),
            in_specs=[
                pl.BlockSpec((bn, hp, wp, c_in), lambda i: (i, 0, 0, 0)),  # x
                pl.BlockSpec((k * k * c_in, c_out), lambda i: (0, 0)),     # W1
                pl.BlockSpec((1, c_out), lambda i: (0, 0)),                # b1
                pl.BlockSpec((c_out, cpad), lambda i: (0, 0)),             # W2
                pl.BlockSpec((1, cpad), lambda i: (0, 0)),                 # b2
            ],
            out_specs=pl.BlockSpec((bn, cpad), lambda i: (i, 0)),
        ),
        compiler_params=pltpu.CompilerParams(
            dimension_semantics=("parallel",)),
    )(x_pad, w1_bf, b1_2d, w2_p, b2_p)

    return out[:, :num_classes]


# --------------------------- pure-JAX reference -------------------------------
def ref_forward(x_nchw, w_hwio, b1, w2, b2):
    x = jnp.transpose(x_nchw, (0, 2, 3, 1))                  # NHWC
    y = jax.lax.conv_general_dilated(
        x, w_hwio, window_strides=(1, 1), padding="SAME",
        dimension_numbers=("NHWC", "HWIO", "NHWC"))
    y = jax.nn.relu(y + b1)
    pooled = jnp.mean(y, axis=(1, 2))                        # [N, C_out]
    return pooled @ w2 + b2


# ----------------------------------- main -------------------------------------
if __name__ == "__main__":
    key = jax.random.PRNGKey(0)
    N, C_IN, H, W = 2, 4, 16, 16
    K, C_OUT, NUM_CLASSES = 3, 32, 10

    k_x, k_w1, k_b1, k_w2, k_b2 = jax.random.split(key, 5)
    x = jax.random.normal(k_x, (N, C_IN, H, W), dtype=jnp.float32)

    # srf (conv) params, stored HWIO then flattened (dy, dx, c) for the matmul.
    w_hwio = 0.1 * jax.random.normal(k_w1, (K, K, C_IN, C_OUT), jnp.float32)
    b1 = 0.1 * jax.random.normal(k_b1, (C_OUT,), jnp.float32)
    # lrf (classifier head) params.
    w2 = 0.1 * jax.random.normal(k_w2, (C_OUT, NUM_CLASSES), jnp.float32)
    b2 = 0.1 * jax.random.normal(k_b2, (NUM_CLASSES,), jnp.float32)

    w1_mat = w_hwio.reshape(K * K * C_IN, C_OUT)             # (dy,dx,c) order

    out = patchcure_forward(x, w1_mat, b1, w2, b2, k=K, pad=1)
    out = jax.block_until_ready(out)

    ref = jax.block_until_ready(ref_forward(x, w_hwio, b1, w2, b2))
    assert out.shape == (N, NUM_CLASSES)
    # bf16 matmul operands (f32 accumulation) -> relaxed tolerance vs the
    # fp32 reference; observed error is well inside this bound.
    assert jnp.allclose(out, ref, atol=2e-2, rtol=2e-2), "mismatch vs reference"

    print("KERNEL_OK")
</pallas_src>

<mosaic_0001>
module attributes {stable_mosaic.version = 11 : i64} {
  func.func @pcure_kernel(%arg0: i32, %arg1: memref<2x18x18x4xf32, #tpu.memory_space<vmem>>, %arg2: memref<36x32xbf16, #tpu.memory_space<vmem>>, %arg3: memref<1x32xf32, #tpu.memory_space<vmem>>, %arg4: memref<32x128xbf16, #tpu.memory_space<vmem>>, %arg5: memref<1x128xf32, #tpu.memory_space<vmem>>, %arg6: memref<2x128xf32, #tpu.memory_space<vmem>>) attributes {dimension_semantics = [#tpu.dimension_semantics<parallel>], iteration_bounds = array<i64: 1>, scalar_prefetch = 0 : i64, scratch_operands = 0 : i64, tpu.core_type = #tpu.core_type<tc>, window_params = [{transform_indices = @transform_0, window_bounds = array<i64: 2, 18, 18, 4>}, {pipeline_mode = #tpu.pipeline_mode<synchronous>, transform_indices = @transform_1, window_bounds = array<i64: 36, 32>}, {pipeline_mode = #tpu.pipeline_mode<synchronous>, transform_indices = @transform_2, window_bounds = array<i64: 1, 32>}, {pipeline_mode = #tpu.pipeline_mode<synchronous>, transform_indices = @transform_3, window_bounds = array<i64: 32, 128>}, {pipeline_mode = #tpu.pipeline_mode<synchronous>, transform_indices = @transform_4, window_bounds = array<i64: 1, 128>}, {transform_indices = @transform_5, window_bounds = array<i64: 2, 128>}]} {
    %c0 = arith.constant 0 : index
    %c0_0 = arith.constant 0 : index
    %c0_1 = arith.constant 0 : index
    %c0_2 = arith.constant 0 : index
    %0 = vector.load %arg1[%c0, %c0_0, %c0_1, %c0_2] : memref<2x18x18x4xf32, #tpu.memory_space<vmem>>, vector<2x18x18x4xf32>
    %1 = vector.extract_strided_slice %0 {offsets = [0, 0, 0, 0], sizes = [2, 16, 16, 4], strides = [1, 1, 1, 1]} : vector<2x18x18x4xf32> to vector<2x16x16x4xf32>
    %2 = vector.extract_strided_slice %0 {offsets = [0, 0, 1, 0], sizes = [2, 16, 16, 4], strides = [1, 1, 1, 1]} : vector<2x18x18x4xf32> to vector<2x16x16x4xf32>
    %3 = vector.extract_strided_slice %0 {offsets = [0, 0, 2, 0], sizes = [2, 16, 16, 4], strides = [1, 1, 1, 1]} : vector<2x18x18x4xf32> to vector<2x16x16x4xf32>
    %4 = vector.extract_strided_slice %0 {offsets = [0, 1, 0, 0], sizes = [2, 16, 16, 4], strides = [1, 1, 1, 1]} : vector<2x18x18x4xf32> to vector<2x16x16x4xf32>
    %5 = vector.extract_strided_slice %0 {offsets = [0, 1, 1, 0], sizes = [2, 16, 16, 4], strides = [1, 1, 1, 1]} : vector<2x18x18x4xf32> to vector<2x16x16x4xf32>
    %6 = vector.extract_strided_slice %0 {offsets = [0, 1, 2, 0], sizes = [2, 16, 16, 4], strides = [1, 1, 1, 1]} : vector<2x18x18x4xf32> to vector<2x16x16x4xf32>
    %7 = vector.extract_strided_slice %0 {offsets = [0, 2, 0, 0], sizes = [2, 16, 16, 4], strides = [1, 1, 1, 1]} : vector<2x18x18x4xf32> to vector<2x16x16x4xf32>
    %8 = vector.extract_strided_slice %0 {offsets = [0, 2, 1, 0], sizes = [2, 16, 16, 4], strides = [1, 1, 1, 1]} : vector<2x18x18x4xf32> to vector<2x16x16x4xf32>
    %9 = vector.extract_strided_slice %0 {offsets = [0, 2, 2, 0], sizes = [2, 16, 16, 4], strides = [1, 1, 1, 1]} : vector<2x18x18x4xf32> to vector<2x16x16x4xf32>
    %10 = tpu.concatenate %1, %2, %3, %4, %5, %6, %7, %8, %9 in 3 : vector<2x16x16x4xf32>, vector<2x16x16x4xf32>, vector<2x16x16x4xf32>, vector<2x16x16x4xf32>, vector<2x16x16x4xf32>, vector<2x16x16x4xf32>, vector<2x16x16x4xf32>, vector<2x16x16x4xf32>, vector<2x16x16x4xf32> -> vector<2x16x16x36xf32>
    %11 = vector.shape_cast %10 : vector<2x16x16x36xf32> to vector<512x36xf32>
    %12 = arith.truncf %11 : vector<512x36xf32> to vector<512x36xbf16>
    %c0_3 = arith.constant 0 : index
    %c0_4 = arith.constant 0 : index
    %13 = vector.load %arg2[%c0_3, %c0_4] : memref<36x32xbf16, #tpu.memory_space<vmem>>, vector<36x32xbf16>
    %cst = arith.constant dense<0.000000e+00> : vector<512x32xf32>
    %14 = tpu.matmul %12, %13, %cst {dimension_numbers = #tpu.dot_dimension_numbers<[1], [0], [0], [1], [0, 0, 1, 1], [], []>} : vector<512x36xbf16>, vector<36x32xbf16>, vector<512x32xf32> -> vector<512x32xf32>
    %c0_5 = arith.constant 0 : index
    %c0_6 = arith.constant 0 : index
    %15 = vector.load %arg3[%c0_5, %c0_6] : memref<1x32xf32, #tpu.memory_space<vmem>>, vector<1x32xf32>
    %16 = vector.broadcast %15 : vector<1x32xf32> to vector<512x32xf32>
    %17 = arith.addf %14, %16 : vector<512x32xf32>
    %cst_7 = arith.constant 0.000000e+00 : f32
    %18 = vector.broadcast %cst_7 : f32 to vector<512x32xf32>
    %19 = arith.maximumf %17, %18 : vector<512x32xf32>
    %20 = vector.shape_cast %19 : vector<512x32xf32> to vector<2x256x32xf32>
    %cst_8 = arith.constant dense<0.000000e+00> : vector<2x32xf32>
    %21 = vector.multi_reduction <add>, %20, %cst_8 [1] : vector<2x256x32xf32> to vector<2x32xf32>
    %22 = arith.truncf %21 : vector<2x32xf32> to vector<2x32xbf16>
    %c0_9 = arith.constant 0 : index
    %c0_10 = arith.constant 0 : index
    %23 = vector.load %arg4[%c0_9, %c0_10] : memref<32x128xbf16, #tpu.memory_space<vmem>>, vector<32x128xbf16>
    %cst_11 = arith.constant dense<0.000000e+00> : vector<2x128xf32>
    %24 = tpu.matmul %22, %23, %cst_11 {dimension_numbers = #tpu.dot_dimension_numbers<[1], [0], [0], [1], [0, 0, 1, 1], [], []>} : vector<2x32xbf16>, vector<32x128xbf16>, vector<2x128xf32> -> vector<2x128xf32>
    %c0_12 = arith.constant 0 : index
    %c0_13 = arith.constant 0 : index
    %25 = vector.load %arg5[%c0_12, %c0_13] : memref<1x128xf32, #tpu.memory_space<vmem>>, vector<1x128xf32>
    %26 = vector.broadcast %25 : vector<1x128xf32> to vector<2x128xf32>
    %27 = arith.addf %24, %26 : vector<2x128xf32>
    %c0_14 = arith.constant 0 : index
    %c0_15 = arith.constant 0 : index
    %28 = vector.load %arg6[%c0_14, %c0_15] : memref<2x128xf32, #tpu.memory_space<vmem>>, vector<2x128xf32>
    tpu.vector_store %arg6[%c0_14, %c0_15], %27 {strides = array<i32>} : memref<2x128xf32, #tpu.memory_space<vmem>>, vector<2x128xf32>,
    return
  }
  func.func @transform_0(%arg0: i32) -> (i32, i32, i32, i32) {
    %c0_i32 = arith.constant 0 : i32
    %c0_i32_0 = arith.constant 0 : i32
    %c0_i32_1 = arith.constant 0 : i32
    %c0_i32_2 = arith.constant 0 : i32
    return %arg0, %c0_i32, %c0_i32_0, %c0_i32_1 : i32, i32, i32, i32
  }
  func.func @transform_1(%arg0: i32) -> (i32, i32) {
    %c0_i32 = arith.constant 0 : i32
    %c0_i32_0 = arith.constant 0 : i32
    %c0_i32_1 = arith.constant 0 : i32
    return %c0_i32, %c0_i32_0 : i32, i32
  }
  func.func @transform_2(%arg0: i32) -> (i32, i32) {
    %c0_i32 = arith.constant 0 : i32
    %c0_i32_0 = arith.constant 0 : i32
    %c0_i32_1 = arith.constant 0 : i32
    return %c0_i32, %c0_i32_0 : i32, i32
  }
  func.func @transform_3(%arg0: i32) -> (i32, i32) {
    %c0_i32 = arith.constant 0 : i32
    %c0_i32_0 = arith.constant 0 : i32
    %c0_i32_1 = arith.constant 0 : i32
    return %c0_i32, %c0_i32_0 : i32, i32
  }
  func.func @transform_4(%arg0: i32) -> (i32, i32) {
    %c0_i32 = arith.constant 0 : i32
    %c0_i32_0 = arith.constant 0 : i32
    %c0_i32_1 = arith.constant 0 : i32
    return %c0_i32, %c0_i32_0 : i32, i32
  }
  func.func @transform_5(%arg0: i32) -> (i32, i32) {
    %c0_i32 = arith.constant 0 : i32
    %c0_i32_0 = arith.constant 0 : i32
    return %arg0, %c0_i32 : i32, i32
  }
}

</mosaic_0001>

<llo_original>
// kernel: patchcure_forward.1
$region0: #{patchcure_forward.1}
  #allocation0 [shape = 'u32[]', space=smem, size = 0x4, offset = 0x4, fixed_abs, tag = 'smem constant byte address 0x4 - core index']
  #allocation1 [shape = 'u32[144,128]{1,0:T(1,128)}', space=vmem, size = 0x12000, scoped, tag = 'internal scratch']
  %s0 = inlined_call_operand.vmem [shape: f32[2,18,18,4], index: 0, kind: input, shape index: {}]
  %s1 = inlined_call_operand.vmem [shape: bf16[36,32], index: 1, kind: input, shape index: {}]
  %s2 = inlined_call_operand.vmem [shape: f32[1,32], index: 2, kind: input, shape index: {}]
  %s3 = inlined_call_operand.vmem [shape: bf16[32,128], index: 3, kind: input, shape index: {}]
  %s4 = inlined_call_operand.vmem [shape: f32[1,128], index: 4, kind: input, shape index: {}]
  %s5 = inlined_call_operand.hbm [shape: f32[2,128], index: 5, kind: output, shape index: {}]
  %s6 = sld [smem:[#allocation0]]
  $region30: #{patchcure_forward.1} parent=0
    _
  %s8 = ssub.s32 1, %s6
  %s9 = scalar_select 0, %s8, %s6
  $region1: #{patchcure_forward.1} parent=0
    #allocation2 [shape = 'u8[1024]{0}', space=vmem, size = 0x400, scoped, tag = 'output window, operand 0, single buffered']
    #allocation3 [shape = 's32[1]{0}', space=sflag, size = 0x4, scoped, tag = 'scoped memory for patchcure_forward.1']
    %10 = vsyncpa [#allocation3], 0
    // Predicated region
    $region2: #{patchcure_forward.1} parent=1 // pred_check
      _
    $region3: #{patchcure_forward.1} parent=1 // pred_check_branch
      %12 = sbr.rel (0) target = $region5
    $region4: #{patchcure_forward.1} parent=1 // pred_region
      _
    $region5: #{patchcure_forward.1} parent=1 // pred_fallthru
      _
    // Predicated region
    $region6: #{patchcure_forward.1} parent=1 // pred_check
      _
    $region7: #{patchcure_forward.1} parent=1 // pred_check_branch
      %14 = sbr.rel (0) target = $region9
    $region8: #{patchcure_forward.1} parent=1 // pred_region
      _
    $region9: #{patchcure_forward.1} parent=1 // pred_fallthru
      _
    // Predicated region
    $region10: #{patchcure_forward.1} parent=1 // pred_check
      _
    $region11: #{patchcure_forward.1} parent=1 // pred_check_branch
      %16 = sbr.rel (0) target = $region13
    $region12: #{patchcure_forward.1} parent=1 // pred_region
      _
    $region13: #{patchcure_forward.1} parent=1 // pred_fallthru
      _
    // Predicated region
    $region14: #{patchcure_forward.1} parent=1 // pred_check
      _
    $region15: #{patchcure_forward.1} parent=1 // pred_check_branch
      %18 = sbr.rel (0) target = $region17
    $region16: #{patchcure_forward.1} parent=1 // pred_region
      _
    $region17: #{patchcure_forward.1} parent=1 // pred_fallthru
      _
    // Predicated region
    $region18: #{patchcure_forward.1} parent=1 // pred_check
      _
    $region19: #{patchcure_forward.1} parent=1 // pred_check_branch
      %20 = sbr.rel (0) target = $region21
    $region20: #{patchcure_forward.1} parent=1 // pred_region
      _
    $region21: #{patchcure_forward.1} parent=1 // pred_fallthru
      _
    %v22 = vld [vmem:[%s0] sm:$0xff]
    %v23 = vld [vmem:[%s0 + $0x8] sm:$0xff]
    %v24 = vld [vmem:[%s0 + $0x10] sm:$0x3]
    %v25 = vld [vmem:[%s0 + $0x18] sm:$0xff]
    %v26 = vld [vmem:[%s0 + $0x20] sm:$0xff]
    %v27 = vld [vmem:[%s0 + $0x28] sm:$0x3]
    %v28 = vld [vmem:[%s0 + $0x30] sm:$0xff]
    %v29 = vld [vmem:[%s0 + $0x38] sm:$0xff]
    %v30 = vld [vmem:[%s0 + $0x40] sm:$0x3]
    %v31 = vld [vmem:[%s0 + $0x48] sm:$0xff]
    %v32 = vld [vmem:[%s0 + $0x50] sm:$0xff]
    %v33 = vld [vmem:[%s0 + $0x58] sm:$0x3]
    %v34 = vld [vmem:[%s0 + $0x60] sm:$0xff]
    %v35 = vld [vmem:[%s0 + $0x68] sm:$0xff]
    %v36 = vld [vmem:[%s0 + $0x70] sm:$0x3]
    %v37 = vld [vmem:[%s0 + $0x78] sm:$0xff]
    %v38 = vld [vmem:[%s0 + $0x80] sm:$0xff]
    %v39 = vld [vmem:[%s0 + $0x88] sm:$0x3]
    %v40 = vld [vmem:[%s0 + $0x90] sm:$0xff]
    %v41 = vld [vmem:[%s0 + $0x98] sm:$0xff]
    %v42 = vld [vmem:[%s0 + $0xa0] sm:$0x3]
    %v43 = vld [vmem:[%s0 + $0xa8] sm:$0xff]
    %v44 = vld [vmem:[%s0 + $0xb0] sm:$0xff]
    %v45 = vld [vmem:[%s0 + $0xb8] sm:$0x3]
    %v46 = vld [vmem:[%s0 + $0xc0] sm:$0xff]
    %v47 = vld [vmem:[%s0 + $0xc8] sm:$0xff]
    %v48 = vld [vmem:[%s0 + $0xd0] sm:$0x3]
    %v49 = vld [vmem:[%s0 + $0xd8] sm:$0xff]
    %v50 = vld [vmem:[%s0 + $0xe0] sm:$0xff]
    %v51 = vld [vmem:[%s0 + $0xe8] sm:$0x3]
    %v52 = vld [vmem:[%s0 + $0xf0] sm:$0xff]
    %v53 = vld [vmem:[%s0 + $0xf8] sm:$0xff]
    %v54 = vld [vmem:[%s0 + $0x100] sm:$0x3]
    %v55 = vld [vmem:[%s0 + $0x108] sm:$0xff]
    %v56 = vld [vmem:[%s0 + $0x110] sm:$0xff]
    %v57 = vld [vmem:[%s0 + $0x118] sm:$0x3]
    %v58 = vld [vmem:[%s0 + $0x120] sm:$0xff]
    %v59 = vld [vmem:[%s0 + $0x128] sm:$0xff]
    %v60 = vld [vmem:[%s0 + $0x130] sm:$0x3]
    %v61 = vld [vmem:[%s0 + $0x138] sm:$0xff]
    %v62 = vld [vmem:[%s0 + $0x140] sm:$0xff]
    %v63 = vld [vmem:[%s0 + $0x148] sm:$0x3]
    %v64 = vld [vmem:[%s0 + $0x150] sm:$0xff]
    %v65 = vld [vmem:[%s0 + $0x158] sm:$0xff]
    %v66 = vld [vmem:[%s0 + $0x160] sm:$0x3]
    %v67 = vld [vmem:[%s0 + $0x168] sm:$0xff]
    %v68 = vld [vmem:[%s0 + $0x170] sm:$0xff]
    %v69 = vld [vmem:[%s0 + $0x178] sm:$0x3]
    %v70 = vld [vmem:[%s0 + $0x180] sm:$0xff]
    %v71 = vld [vmem:[%s0 + $0x188] sm:$0xff]
    %v72 = vld [vmem:[%s0 + $0x190] sm:$0x3]
    %v73 = vld [vmem:[%s0 + $0x198] sm:$0xff]
    %v74 = vld [vmem:[%s0 + $0x1a0] sm:$0xff]
    %v75 = vld [vmem:[%s0 + $0x1a8] sm:$0x3]
    %v76 = vld [vmem:[%s0 + $0x1b0] sm:$0xff]
    %v77 = vld [vmem:[%s0 + $0x1b8] sm:$0xff]
    %v78 = vld [vmem:[%s0 + $0x1c0] sm:$0x3]
    %v79 = vld [vmem:[%s0 + $0x1c8] sm:$0xff]
    %v80 = vld [vmem:[%s0 + $0x1d0] sm:$0xff]
    %v81 = vld [vmem:[%s0 + $0x1d8] sm:$0x3]
    %v82 = vld [vmem:[%s0 + $0x1e0] sm:$0xff]
    %v83 = vld [vmem:[%s0 + $0x1e8] sm:$0xff]
    %v84 = vld [vmem:[%s0 + $0x1f0] sm:$0x3]
    %v85 = vld [vmem:[%s0 + $0x1f8] sm:$0xff]
    %v86 = vld [vmem:[%s0 + $0x200] sm:$0xff]
    %v87 = vld [vmem:[%s0 + $0x208] sm:$0x3]
    %v88 = vld [vmem:[%s0 + $0x210] sm:$0xff]
    %v89 = vld [vmem:[%s0 + $0x218] sm:$0xff]
    %v90 = vld [vmem:[%s0 + $0x220] sm:$0x3]
    %v91 = vld [vmem:[%s0 + $0x228] sm:$0xff]
    %v92 = vld [vmem:[%s0 + $0x230] sm:$0xff]
    %v93 = vld [vmem:[%s0 + $0x238] sm:$0x3]
    %v94 = vld [vmem:[%s0 + $0x240] sm:$0xff]
    %v95 = vld [vmem:[%s0 + $0x248] sm:$0xff]
    %v96 = vld [vmem:[%s0 + $0x250] sm:$0x3]
    %v97 = vld [vmem:[%s0 + $0x258] sm:$0xff]
    %v98 = vld [vmem:[%s0 + $0x260] sm:$0xff]
    %v99 = vld [vmem:[%s0 + $0x268] sm:$0x3]
    %v100 = vld [vmem:[%s0 + $0x270] sm:$0xff]
    %v101 = vld [vmem:[%s0 + $0x278] sm:$0xff]
    %v102 = vld [vmem:[%s0 + $0x280] sm:$0x3]
    %v103 = vld [vmem:[%s0 + $0x288] sm:$0xff]
    %v104 = vld [vmem:[%s0 + $0x290] sm:$0xff]
    %v105 = vld [vmem:[%s0 + $0x298] sm:$0x3]
    %v106 = vld [vmem:[%s0 + $0x2a0] sm:$0xff]
    %v107 = vld [vmem:[%s0 + $0x2a8] sm:$0xff]
    %v108 = vld [vmem:[%s0 + $0x2b0] sm:$0x3]
    %v109 = vld [vmem:[%s0 + $0x2b8] sm:$0xff]
    %v110 = vld [vmem:[%s0 + $0x2c0] sm:$0xff]
    %v111 = vld [vmem:[%s0 + $0x2c8] sm:$0x3]
    %v112 = vld [vmem:[%s0 + $0x2d0] sm:$0xff]
    %v113 = vld [vmem:[%s0 + $0x2d8] sm:$0xff]
    %v114 = vld [vmem:[%s0 + $0x2e0] sm:$0x3]
    %v115 = vld [vmem:[%s0 + $0x2e8] sm:$0xff]
    %v116 = vld [vmem:[%s0 + $0x2f0] sm:$0xff]
    %v117 = vld [vmem:[%s0 + $0x2f8] sm:$0x3]
    %v118 = vld [vmem:[%s0 + $0x300] sm:$0xff]
    %v119 = vld [vmem:[%s0 + $0x308] sm:$0xff]
    %v120 = vld [vmem:[%s0 + $0x310] sm:$0x3]
    %v121 = vld [vmem:[%s0 + $0x318] sm:$0xff]
    %v122 = vld [vmem:[%s0 + $0x320] sm:$0xff]
    %v123 = vld [vmem:[%s0 + $0x328] sm:$0x3]
    %v124 = vld [vmem:[%s0 + $0x330] sm:$0xff]
    %v125 = vld [vmem:[%s0 + $0x338] sm:$0xff]
    %v126 = vld [vmem:[%s0 + $0x340] sm:$0x3]
    %v127 = vld [vmem:[%s0 + $0x348] sm:$0xff]
    %v128 = vld [vmem:[%s0 + $0x350] sm:$0xff]
    %v129 = vld [vmem:[%s0 + $0x358] sm:$0x3]
    %vm226 = vcmask 1046528
    %v227 = vrot.slane %v22, 1
    %v228 = vrot.slane %v23, 1
    %v229 = vsel %vm226, %v227, %v228
    %v230 = vrot.slane %v24, 1
    %v231 = vsel %vm226, %v228, %v230
    %v232 = vrot.slane %v25, 1
    %v233 = vrot.slane %v26, 1
    %v234 = vsel %vm226, %v232, %v233
    %v235 = vrot.slane %v27, 1
    %v236 = vsel %vm226, %v233, %v235
    %v237 = vrot.slane %v28, 1
    %v238 = vrot.slane %v29, 1
    %v239 = vsel %vm226, %v237, %v238
    %v240 = vrot.slane %v30, 1
    %v241 = vsel %vm226, %v238, %v240
    %v242 = vrot.slane %v31, 1
    %v243 = vrot.slane %v32, 1
    %v244 = vsel %vm226, %v242, %v243
    %v245 = vrot.slane %v33, 1
    %v246 = vsel %vm226, %v243, %v245
    %v247 = vrot.slane %v34, 1
    %v248 = vrot.slane %v35, 1
    %v249 = vsel %vm226, %v247, %v248
    %v250 = vrot.slane %v36, 1
    %v251 = vsel %vm226, %v248, %v250
    %v252 = vrot.slane %v37, 1
    %v253 = vrot.slane %v38, 1
    %v254 = vsel %vm226, %v252, %v253
    %v255 = vrot.slane %v39, 1
    %v256 = vsel %vm226, %v253, %v255
    %v257 = vrot.slane %v40, 1
    %v258 = vrot.slane %v41, 1
    %v259 = vsel %vm226, %v257, %v258
    %v260 = vrot.slane %v42, 1
    %v261 = vsel %vm226, %v258, %v260
    %v262 = vrot.slane %v43, 1
    %v263 = vrot.slane %v44, 1
    %v264 = vsel %vm226, %v262, %v263
    %v265 = vrot.slane %v45, 1
    %v266 = vsel %vm226, %v263, %v265
    %v267 = vrot.slane %v46, 1
    %v268 = vrot.slane %v47, 1
    %v269 = vsel %vm226, %v267, %v268
    %v270 = vrot.slane %v48, 1
    %v271 = vsel %vm226, %v268, %v270
    %v272 = vrot.slane %v49, 1
    %v273 = vrot.slane %v50, 1
    %v274 = vsel %vm226, %v272, %v273
    %v275 = vrot.slane %v51, 1
    %v276 = vsel %vm226, %v273, %v275
    %v277 = vrot.slane %v52, 1
    %v278 = vrot.slane %v53, 1
    %v279 = vsel %vm226, %v277, %v278
    %v280 = vrot.slane %v54, 1
    %v281 = vsel %vm226, %v278, %v280
    %v282 = vrot.slane %v55, 1
    %v283 = vrot.slane %v56, 1
    %v284 = vsel %vm226, %v282, %v283
    %v285 = vrot.slane %v57, 1
    %v286 = vsel %vm226, %v283, %v285
    %v287 = vrot.slane %v58, 1
    %v288 = vrot.slane %v59, 1
    %v289 = vsel %vm226, %v287, %v288
    %v290 = vrot.slane %v60, 1
    %v291 = vsel %vm226, %v288, %v290
    %v292 = vrot.slane %v61, 1
    %v293 = vrot.slane %v62, 1
    %v294 = vsel %vm226, %v292, %v293
    %v295 = vrot.slane %v63, 1
    %v296 = vsel %vm226, %v293, %v295
    %v297 = vrot.slane %v64, 1
    %v298 = vrot.slane %v65, 1
    %v299 = vsel %vm226, %v297, %v298
    %v300 = vrot.slane %v66, 1
    %v301 = vsel %vm226, %v298, %v300
    %v302 = vrot.slane %v67, 1
    %v303 = vrot.slane %v68, 1
    %v304 = vsel %vm226, %v302, %v303
    %v305 = vrot.slane %v69, 1
    %v306 = vsel %vm226, %v303, %v305
    %v307 = vrot.slane %v76, 1
    %v308 = vrot.slane %v77, 1
    %v309 = vsel %vm226, %v307, %v308
    %v310 = vrot.slane %v78, 1
    %v311 = vsel %vm226, %v308, %v310
    %v312 = vrot.slane %v79, 1
    %v313 = vrot.slane %v80, 1
    %v314 = vsel %vm226, %v312, %v313
    %v315 = vrot.slane %v81, 1
    %v316 = vsel %vm226, %v313, %v315
    %v317 = vrot.slane %v82, 1
    %v318 = vrot.slane %v83, 1
    %v319 = vsel %vm226, %v317, %v318
    %v320 = vrot.slane %v84, 1
    %v321 = vsel %vm226, %v318, %v320
    %v322 = vrot.slane %v85, 1
    %v323 = vrot.slane %v86, 1
    %v324 = vsel %vm226, %v322, %v323
    %v325 = vrot.slane %v87, 1
    %v326 = vsel %vm226, %v323, %v325
    %v327 = vrot.slane %v88, 1
    %v328 = vrot.slane %v89, 1
    %v329 = vsel %vm226, %v327, %v328
    %v330 = vrot.slane %v90, 1
    %v331 = vsel %vm226, %v328, %v330
    %v332 = vrot.slane %v91, 1
    %v333 = vrot.slane %v92, 1
    %v334 = vsel %vm226, %v332, %v333
    %v335 = vrot.slane %v93, 1
    %v336 = vsel %vm226, %v333, %v335
    %v337 = vrot.slane %v94, 1
    %v338 = vrot.slane %v95, 1
    %v339 = vsel %vm226, %v337, %v338
    %v340 = vrot.slane %v96, 1
    %v341 = vsel %vm226, %v338, %v340
    %v342 = vrot.slane %v97, 1
    %v343 = vrot.slane %v98, 1
    %v344 = vsel %vm226, %v342, %v343
    %v345 = vrot.slane %v99, 1
    %v346 = vsel %vm226, %v343, %v345
    %v347 = vrot.slane %v100, 1
    %v348 = vrot.slane %v101, 1
    %v349 = vsel %vm226, %v347, %v348
    %v350 = vrot.slane %v102, 1
    %v351 = vsel %vm226, %v348, %v350
    %v352 = vrot.slane %v103, 1
    %v353 = vrot.slane %v104, 1
    %v354 = vsel %vm226, %v352, %v353
    %v355 = vrot.slane %v105, 1
    %v356 = vsel %vm226, %v353, %v355
    %v357 = vrot.slane %v106, 1
    %v358 = vrot.slane %v107, 1
    %v359 = vsel %vm226, %v357, %v358
    %v360 = vrot.slane %v108, 1
    %v361 = vsel %vm226, %v358, %v360
    %v362 = vrot.slane %v109, 1
    %v363 = vrot.slane %v110, 1
    %v364 = vsel %vm226, %v362, %v363
    %v365 = vrot.slane %v111, 1
    %v366 = vsel %vm226, %v363, %v365
    %v367 = vrot.slane %v112, 1
    %v368 = vrot.slane %v113, 1
    %v369 = vsel %vm226, %v367, %v368
    %v370 = vrot.slane %v114, 1
    %v371 = vsel %vm226, %v368, %v370
    %v372 = vrot.slane %v115, 1
    %v373 = vrot.slane %v116, 1
    %v374 = vsel %vm226, %v372, %v373
    %v375 = vrot.slane %v117, 1
    %v376 = vsel %vm226, %v373, %v375
    %v377 = vrot.slane %v118, 1
    %v378 = vrot.slane %v119, 1
    %v379 = vsel %vm226, %v377, %v378
    %v380 = vrot.slane %v120, 1
    %v381 = vsel %vm226, %v378, %v380
    %v382 = vrot.slane %v121, 1
    %v383 = vrot.slane %v122, 1
    %v384 = vsel %vm226, %v382, %v383
    %v385 = vrot.slane %v123, 1
    %v386 = vsel %vm226, %v383, %v385
    %387 = vrot.lane.b32.xlu0 %v229, 4
    %v388 = vpop.permute.xlu0 %387
    %389 = vrot.lane.b32.xlu0 %v231, 4
    %v390 = vpop.permute.xlu0 %389
    %391 = vrot.lane.b32.xlu0 %v234, 4
    %v392 = vpop.permute.xlu0 %391
    %393 = vrot.lane.b32.xlu0 %v236, 4
    %v394 = vpop.permute.xlu0 %393
    %395 = vrot.lane.b32.xlu0 %v239, 4
    %v396 = vpop.permute.xlu0 %395
    %397 = vrot.lane.b32.xlu0 %v241, 4
    %v398 = vpop.permute.xlu0 %397
    %399 = vrot.lane.b32.xlu0 %v244, 4
    %v400 = vpop.permute.xlu0 %399
    %401 = vrot.lane.b32.xlu0 %v246, 4
    %v402 = vpop.permute.xlu0 %401
    %403 = vrot.lane.b32.xlu0 %v249, 4
    %v404 = vpop.permute.xlu0 %403
    %405 = vrot.lane.b32.xlu0 %v251, 4
    %v406 = vpop.permute.xlu0 %405
    %407 = vrot.lane.b32.xlu0 %v254, 4
    %v408 = vpop.permute.xlu0 %407
    %409 = vrot.lane.b32.xlu0 %v256, 4
    %v410 = vpop.permute.xlu0 %409
    %411 = vrot.lane.b32.xlu0 %v259, 4
    %v412 = vpop.permute.xlu0 %411
    %413 = vrot.lane.b32.xlu0 %v261, 4
    %v414 = vpop.permute.xlu0 %413
    %415 = vrot.lane.b32.xlu0 %v264, 4
    %v416 = vpop.permute.xlu0 %415
    %417 = vrot.lane.b32.xlu0 %v266, 4
    %v418 = vpop.permute.xlu0 %417
    %419 = vrot.lane.b32.xlu0 %v269, 4
    %v420 = vpop.permute.xlu0 %419
    %421 = vrot.lane.b32.xlu0 %v271, 4
    %v422 = vpop.permute.xlu0 %421
    %423 = vrot.lane.b32.xlu0 %v274, 4
    %v424 = vpop.permute.xlu0 %423
    %425 = vrot.lane.b32.xlu0 %v276, 4
    %v426 = vpop.permute.xlu0 %425
    %427 = vrot.lane.b32.xlu0 %v279, 4
    %v428 = vpop.permute.xlu0 %427
    %429 = vrot.lane.b32.xlu0 %v281, 4
    %v430 = vpop.permute.xlu0 %429
    %431 = vrot.lane.b32.xlu0 %v284, 4
    %v432 = vpop.permute.xlu0 %431
    %433 = vrot.lane.b32.xlu0 %v286, 4
    %v434 = vpop.permute.xlu0 %433
    %435 = vrot.lane.b32.xlu0 %v289, 4
    %v436 = vpop.permute.xlu0 %435
    %437 = vrot.lane.b32.xlu0 %v291, 4
    %v438 = vpop.permute.xlu0 %437
    %439 = vrot.lane.b32.xlu0 %v294, 4
    %v440 = vpop.permute.xlu0 %439
    %441 = vrot.lane.b32.xlu0 %v296, 4
    %v442 = vpop.permute.xlu0 %441
    %443 = vrot.lane.b32.xlu0 %v299, 4
    %v444 = vpop.permute.xlu0 %443
    %445 = vrot.lane.b32.xlu0 %v301, 4
    %v446 = vpop.permute.xlu0 %445
    %447 = vrot.lane.b32.xlu0 %v304, 4
    %v448 = vpop.permute.xlu0 %447
    %449 = vrot.lane.b32.xlu0 %v306, 4
    %v450 = vpop.permute.xlu0 %449
    %451 = vrot.lane.b32.xlu0 %v309, 4
    %v452 = vpop.permute.xlu0 %451
    %453 = vrot.lane.b32.xlu0 %v311, 4
    %v454 = vpop.permute.xlu0 %453
    %455 = vrot.lane.b32.xlu0 %v314, 4
    %v456 = vpop.permute.xlu0 %455
    %457 = vrot.lane.b32.xlu0 %v316, 4
    %v458 = vpop.permute.xlu0 %457
    %459 = vrot.lane.b32.xlu0 %v319, 4
    %v460 = vpop.permute.xlu0 %459
    %461 = vrot.lane.b32.xlu0 %v321, 4
    %v462 = vpop.permute.xlu0 %461
    %463 = vrot.lane.b32.xlu0 %v324, 4
    %v464 = vpop.permute.xlu0 %463
    %465 = vrot.lane.b32.xlu0 %v326, 4
    %v466 = vpop.permute.xlu0 %465
    %467 = vrot.lane.b32.xlu0 %v329, 4
    %v468 = vpop.permute.xlu0 %467
    %469 = vrot.lane.b32.xlu0 %v331, 4
    %v470 = vpop.permute.xlu0 %469
    %471 = vrot.lane.b32.xlu0 %v334, 4
    %v472 = vpop.permute.xlu0 %471
    %473 = vrot.lane.b32.xlu0 %v336, 4
    %v474 = vpop.permute.xlu0 %473
    %475 = vrot.lane.b32.xlu0 %v339, 4
    %v476 = vpop.permute.xlu0 %475
    %477 = vrot.lane.b32.xlu0 %v341, 4
    %v478 = vpop.permute.xlu0 %477
    %479 = vrot.lane.b32.xlu0 %v344, 4
    %v480 = vpop.permute.xlu0 %479
    %481 = vrot.lane.b32.xlu0 %v346, 4
    %v482 = vpop.permute.xlu0 %481
    %483 = vrot.lane.b32.xlu0 %v349, 4
    %v484 = vpop.permute.xlu0 %483
    %485 = vrot.lane.b32.xlu0 %v351, 4
    %v486 = vpop.permute.xlu0 %485
    %487 = vrot.lane.b32.xlu0 %v354, 4
    %v488 = vpop.permute.xlu0 %487
    %489 = vrot.lane.b32.xlu0 %v356, 4
    %v490 = vpop.permute.xlu0 %489
    %491 = vrot.lane.b32.xlu0 %v359, 4
    %v492 = vpop.permute.xlu0 %491
    %493 = vrot.lane.b32.xlu0 %v361, 4
    %v494 = vpop.permute.xlu0 %493
    %495 = vrot.lane.b32.xlu0 %v364, 4
    %v496 = vpop.permute.xlu0 %495
    %497 = vrot.lane.b32.xlu0 %v366, 4
    %v498 = vpop.permute.xlu0 %497
    %499 = vrot.lane.b32.xlu0 %v369, 4
    %v500 = vpop.permute.xlu0 %499
    %501 = vrot.lane.b32.xlu0 %v371, 4
    %v502 = vpop.permute.xlu0 %501
    %503 = vrot.lane.b32.xlu0 %v374, 4
    %v504 = vpop.permute.xlu0 %503
    %505 = vrot.lane.b32.xlu0 %v376, 4
    %v506 = vpop.permute.xlu0 %505
    %507 = vrot.lane.b32.xlu0 %v379, 4
    %v508 = vpop.permute.xlu0 %507
    %509 = vrot.lane.b32.xlu0 %v381, 4
    %v510 = vpop.permute.xlu0 %509
    %511 = vrot.lane.b32.xlu0 %v384, 4
    %v512 = vpop.permute.xlu0 %511
    %513 = vrot.lane.b32.xlu0 %v386, 4
    %v514 = vpop.permute.xlu0 %513
    %vm579 = vcmask 1045504
    %v580 = vrot.slane %v22, 2
    %v581 = vrot.slane %v23, 2
    %v582 = vsel %vm579, %v580, %v581
    %v583 = vrot.slane %v24, 2
    %v584 = vsel %vm579, %v581, %v583
    %v585 = vrot.slane %v25, 2
    %v586 = vrot.slane %v26, 2
    %v587 = vsel %vm579, %v585, %v586
    %v588 = vrot.slane %v27, 2
    %v589 = vsel %vm579, %v586, %v588
    %v590 = vrot.slane %v28, 2
    %v591 = vrot.slane %v29, 2
    %v592 = vsel %vm579, %v590, %v591
    %v593 = vrot.slane %v30, 2
    %v594 = vsel %vm579, %v591, %v593
    %v595 = vrot.slane %v31, 2
    %v596 = vrot.slane %v32, 2
    %v597 = vsel %vm579, %v595, %v596
    %v598 = vrot.slane %v33, 2
    %v599 = vsel %vm579, %v596, %v598
    %v600 = vrot.slane %v34, 2
    %v601 = vrot.slane %v35, 2
    %v602 = vsel %vm579, %v600, %v601
    %v603 = vrot.slane %v36, 2
    %v604 = vsel %vm579, %v601, %v603
    %v605 = vrot.slane %v37, 2
    %v606 = vrot.slane %v38, 2
    %v607 = vsel %vm579, %v605, %v606
    %v608 = vrot.slane %v39, 2
    %v609 = vsel %vm579, %v606, %v608
    %v610 = vrot.slane %v40, 2
    %v611 = vrot.slane %v41, 2
    %v612 = vsel %vm579, %v610, %v611
    %v613 = vrot.slane %v42, 2
    %v614 = vsel %vm579, %v611, %v613
    %v615 = vrot.slane %v43, 2
    %v616 = vrot.slane %v44, 2
    %v617 = vsel %vm579, %v615, %v616
    %v618 = vrot.slane %v45, 2
    %v619 = vsel %vm579, %v616, %v618
    %v620 = vrot.slane %v46, 2
    %v621 = vrot.slane %v47, 2
    %v622 = vsel %vm579, %v620, %v621
    %v623 = vrot.slane %v48, 2
    %v624 = vsel %vm579, %v621, %v623
    %v625 = vrot.slane %v49, 2
    %v626 = vrot.slane %v50, 2
    %v627 = vsel %vm579, %v625, %v626
    %v628 = vrot.slane %v51, 2
    %v629 = vsel %vm579, %v626, %v628
    %v630 = vrot.slane %v52, 2
    %v631 = vrot.slane %v53, 2
    %v632 = vsel %vm579, %v630, %v631
    %v633 = vrot.slane %v54, 2
    %v634 = vsel %vm579, %v631, %v633
    %v635 = vrot.slane %v55, 2
    %v636 = vrot.slane %v56, 2
    %v637 = vsel %vm579, %v635, %v636
    %v638 = vrot.slane %v57, 2
    %v639 = vsel %vm579, %v636, %v638
    %v640 = vrot.slane %v58, 2
    %v641 = vrot.slane %v59, 2
    %v642 = vsel %vm579, %v640, %v641
    %v643 = vrot.slane %v60, 2
    %v644 = vsel %vm579, %v641, %v643
    %v645 = vrot.slane %v61, 2
    %v646 = vrot.slane %v62, 2
    %v647 = vsel %vm579, %v645, %v646
    %v648 = vrot.slane %v63, 2
    %v649 = vsel %vm579, %v646, %v648
    %v650 = vrot.slane %v64, 2
    %v651 = vrot.slane %v65, 2
    %v652 = vsel %vm579, %v650, %v651
    %v653 = vrot.slane %v66, 2
    %v654 = vsel %vm579, %v651, %v653
    %v655 = vrot.slane %v67, 2
    %v656 = vrot.slane %v68, 2
    %v657 = vsel %vm579, %v655, %v656
    %v658 = vrot.slane %v69, 2
    %v659 = vsel %vm579, %v656, %v658
    %v660 = vrot.slane %v76, 2
    %v661 = vrot.slane %v77, 2
    %v662 = vsel %vm579, %v660, %v661
    %v663 = vrot.slane %v78, 2
    %v664 = vsel %vm579, %v661, %v663
    %v665 = vrot.slane %v79, 2
    %v666 = vrot.slane %v80, 2
    %v667 = vsel %vm579, %v665, %v666
    %v668 = vrot.slane %v81, 2
    %v669 = vsel %vm579, %v666, %v668
    %v670 = vrot.slane %v82, 2
    %v671 = vrot.slane %v83, 2
    %v672 = vsel %vm579, %v670, %v671
    %v673 = vrot.slane %v84, 2
    %v674 = vsel %vm579, %v671, %v673
    %v675 = vrot.slane %v85, 2
    %v676 = vrot.slane %v86, 2
    %v677 = vsel %vm579, %v675, %v676
    %v678 = vrot.slane %v87, 2
    %v679 = vsel %vm579, %v676, %v678
    %v680 = vrot.slane %v88, 2
    %v681 = vrot.slane %v89, 2
    %v682 = vsel %vm579, %v680, %v681
    %v683 = vrot.slane %v90, 2
    %v684 = vsel %vm579, %v681, %v683
    %v685 = vrot.slane %v91, 2
    %v686 = vrot.slane %v92, 2
    %v687 = vsel %vm579, %v685, %v686
    %v688 = vrot.slane %v93, 2
    %v689 = vsel %vm579, %v686, %v688
    %v690 = vrot.slane %v94, 2
    %v691 = vrot.slane %v95, 2
    %v692 = vsel %vm579, %v690, %v691
    %v693 = vrot.slane %v96, 2
    %v694 = vsel %vm579, %v691, %v693
    %v695 = vrot.slane %v97, 2
    %v696 = vrot.slane %v98, 2
    %v697 = vsel %vm579, %v695, %v696
    %v698 = vrot.slane %v99, 2
    %v699 = vsel %vm579, %v696, %v698
    %v700 = vrot.slane %v100, 2
    %v701 = vrot.slane %v101, 2
    %v702 = vsel %vm579, %v700, %v701
    %v703 = vrot.slane %v102, 2
    %v704 = vsel %vm579, %v701, %v703
    %v705 = vrot.slane %v103, 2
    %v706 = vrot.slane %v104, 2
    %v707 = vsel %vm579, %v705, %v706
    %v708 = vrot.slane %v105, 2
    %v709 = vsel %vm579, %v706, %v708
    %v710 = vrot.slane %v106, 2
    %v711 = vrot.slane %v107, 2
    %v712 = vsel %vm579, %v710, %v711
    %v713 = vrot.slane %v108, 2
    %v714 = vsel %vm579, %v711, %v713
    %v715 = vrot.slane %v109, 2
    %v716 = vrot.slane %v110, 2
    %v717 = vsel %vm579, %v715, %v716
    %v718 = vrot.slane %v111, 2
    %v719 = vsel %vm579, %v716, %v718
    %v720 = vrot.slane %v112, 2
    %v721 = vrot.slane %v113, 2
    %v722 = vsel %vm579, %v720, %v721
    %v723 = vrot.slane %v114, 2
    %v724 = vsel %vm579, %v721, %v723
    %v725 = vrot.slane %v115, 2
    %v726 = vrot.slane %v116, 2
    %v727 = vsel %vm579, %v725, %v726
    %v728 = vrot.slane %v117, 2
    %v729 = vsel %vm579, %v726, %v728
    %v730 = vrot.slane %v118, 2
    %v731 = vrot.slane %v119, 2
    %v732 = vsel %vm579, %v730, %v731
    %v733 = vrot.slane %v120, 2
    %v734 = vsel %vm579, %v731, %v733
    %v735 = vrot.slane %v121, 2
    %v736 = vrot.slane %v122, 2
    %v737 = vsel %vm579, %v735, %v736
    %v738 = vrot.slane %v123, 2
    %v739 = vsel %vm579, %v736, %v738
    %740 = vrot.lane.b32.xlu0 %v582, 8
    %v741 = vpop.permute.xlu0 %740
    %742 = vrot.lane.b32.xlu0 %v584, 8
    %v743 = vpop.permute.xlu0 %742
    %744 = vrot.lane.b32.xlu0 %v587, 8
    %v745 = vpop.permute.xlu0 %744
    %746 = vrot.lane.b32.xlu0 %v589, 8
    %v747 = vpop.permute.xlu0 %746
    %748 = vrot.lane.b32.xlu0 %v592, 8
    %v749 = vpop.permute.xlu0 %748
    %750 = vrot.lane.b32.xlu0 %v594, 8
    %v751 = vpop.permute.xlu0 %750
    %752 = vrot.lane.b32.xlu0 %v597, 8
    %v753 = vpop.permute.xlu0 %752
    %754 = vrot.lane.b32.xlu0 %v599, 8
    %v755 = vpop.permute.xlu0 %754
    %756 = vrot.lane.b32.xlu0 %v602, 8
    %v757 = vpop.permute.xlu0 %756
    %758 = vrot.lane.b32.xlu0 %v604, 8
    %v759 = vpop.permute.xlu0 %758
    %760 = vrot.lane.b32.xlu0 %v607, 8
    %v761 = vpop.permute.xlu0 %760
    %762 = vrot.lane.b32.xlu0 %v609, 8
    %v763 = vpop.permute.xlu0 %762
    %764 = vrot.lane.b32.xlu0 %v612, 8
    %v765 = vpop.permute.xlu0 %764
    %766 = vrot.lane.b32.xlu0 %v614, 8
    %v767 = vpop.permute.xlu0 %766
    %768 = vrot.lane.b32.xlu0 %v617, 8
    %v769 = vpop.permute.xlu0 %768
    %770 = vrot.lane.b32.xlu0 %v619, 8
    %v771 = vpop.permute.xlu0 %770
    %772 = vrot.lane.b32.xlu0 %v622, 8
    %v773 = vpop.permute.xlu0 %772
    %774 = vrot.lane.b32.xlu0 %v624, 8
    %v775 = vpop.permute.xlu0 %774
    %776 = vrot.lane.b32.xlu0 %v627, 8
    %v777 = vpop.permute.xlu0 %776
    %778 = vrot.lane.b32.xlu0 %v629, 8
    %v779 = vpop.permute.xlu0 %778
    %780 = vrot.lane.b32.xlu0 %v632, 8
    %v781 = vpop.permute.xlu0 %780
    %782 = vrot.lane.b32.xlu0 %v634, 8
    %v783 = vpop.permute.xlu0 %782
    %784 = vrot.lane.b32.xlu0 %v637, 8
    %v785 = vpop.permute.xlu0 %784
    %786 = vrot.lane.b32.xlu0 %v639, 8
    %v787 = vpop.permute.xlu0 %786
    %788 = vrot.lane.b32.xlu0 %v642, 8
    %v789 = vpop.permute.xlu0 %788
    %790 = vrot.lane.b32.xlu0 %v644, 8
    %v791 = vpop.permute.xlu0 %790
    %792 = vrot.lane.b32.xlu0 %v647, 8
    %v793 = vpop.permute.xlu0 %792
    %794 = vrot.lane.b32.xlu0 %v649, 8
    %v795 = vpop.permute.xlu0 %794
    %796 = vrot.lane.b32.xlu0 %v652, 8
    %v797 = vpop.permute.xlu0 %796
    %798 = vrot.lane.b32.xlu0 %v654, 8
    %v799 = vpop.permute.xlu0 %798
    %800 = vrot.lane.b32.xlu0 %v657, 8
    %v801 = vpop.permute.xlu0 %800
    %802 = vrot.lane.b32.xlu0 %v659, 8
    %v803 = vpop.permute.xlu0 %802
    %804 = vrot.lane.b32.xlu0 %v662, 8
    %v805 = vpop.permute.xlu0 %804
    %806 = vrot.lane.b32.xlu0 %v664, 8
    %v807 = vpop.permute.xlu0 %806
    %808 = vrot.lane.b32.xlu0 %v667, 8
    %v809 = vpop.permute.xlu0 %808
    %810 = vrot.lane.b32.xlu0 %v669, 8
    %v811 = vpop.permute.xlu0 %810
    %812 = vrot.lane.b32.xlu0 %v672, 8
    %v813 = vpop.permute.xlu0 %812
    %814 = vrot.lane.b32.xlu0 %v674, 8
    %v815 = vpop.permute.xlu0 %814
    %816 = vrot.lane.b32.xlu0 %v677, 8
    %v817 = vpop.permute.xlu0 %816
    %818 = vrot.lane.b32.xlu0 %v679, 8
    %v819 = vpop.permute.xlu0 %818
    %820 = vrot.lane.b32.xlu0 %v682, 8
    %v821 = vpop.permute.xlu0 %820
    %822 = vrot.lane.b32.xlu0 %v684, 8
    %v823 = vpop.permute.xlu0 %822
    %824 = vrot.lane.b32.xlu0 %v687, 8
    %v825 = vpop.permute.xlu0 %824
    %826 = vrot.lane.b32.xlu0 %v689, 8
    %v827 = vpop.permute.xlu0 %826
    %828 = vrot.lane.b32.xlu0 %v692, 8
    %v829 = vpop.permute.xlu0 %828
    %830 = vrot.lane.b32.xlu0 %v694, 8
    %v831 = vpop.permute.xlu0 %830
    %832 = vrot.lane.b32.xlu0 %v697, 8
    %v833 = vpop.permute.xlu0 %832
    %834 = vrot.lane.b32.xlu0 %v699, 8
    %v835 = vpop.permute.xlu0 %834
    %836 = vrot.lane.b32.xlu0 %v702, 8
    %v837 = vpop.permute.xlu0 %836
    %838 = vrot.lane.b32.xlu0 %v704, 8
    %v839 = vpop.permute.xlu0 %838
    %840 = vrot.lane.b32.xlu0 %v707, 8
    %v841 = vpop.permute.xlu0 %840
    %842 = vrot.lane.b32.xlu0 %v709, 8
    %v843 = vpop.permute.xlu0 %842
    %844 = vrot.lane.b32.xlu0 %v712, 8
    %v845 = vpop.permute.xlu0 %844
    %846 = vrot.lane.b32.xlu0 %v714, 8
    %v847 = vpop.permute.xlu0 %846
    %848 = vrot.lane.b32.xlu0 %v717, 8
    %v849 = vpop.permute.xlu0 %848
    %850 = vrot.lane.b32.xlu0 %v719, 8
    %v851 = vpop.permute.xlu0 %850
    %852 = vrot.lane.b32.xlu0 %v722, 8
    %v853 = vpop.permute.xlu0 %852
    %854 = vrot.lane.b32.xlu0 %v724, 8
    %v855 = vpop.permute.xlu0 %854
    %856 = vrot.lane.b32.xlu0 %v727, 8
    %v857 = vpop.permute.xlu0 %856
    %858 = vrot.lane.b32.xlu0 %v729, 8
    %v859 = vpop.permute.xlu0 %858
    %860 = vrot.lane.b32.xlu0 %v732, 8
    %v861 = vpop.permute.xlu0 %860
    %862 = vrot.lane.b32.xlu0 %v734, 8
    %v863 = vpop.permute.xlu0 %862
    %864 = vrot.lane.b32.xlu0 %v737, 8
    %v865 = vpop.permute.xlu0 %864
    %866 = vrot.lane.b32.xlu0 %v739, 8
    %v867 = vpop.permute.xlu0 %866
    %936 = vrot.lane.b32.xlu0 %v25, 12
    %v937 = vpop.permute.xlu0 %936
    %938 = vrot.lane.b32.xlu0 %v26, 12
    %v939 = vpop.permute.xlu0 %938
    %940 = vrot.lane.b32.xlu0 %v28, 12
    %v941 = vpop.permute.xlu0 %940
    %942 = vrot.lane.b32.xlu0 %v29, 12
    %v943 = vpop.permute.xlu0 %942
    %944 = vrot.lane.b32.xlu0 %v31, 12
    %v945 = vpop.permute.xlu0 %944
    %946 = vrot.lane.b32.xlu0 %v32, 12
    %v947 = vpop.permute.xlu0 %946
    %948 = vrot.lane.b32.xlu0 %v34, 12
    %v949 = vpop.permute.xlu0 %948
    %950 = vrot.lane.b32.xlu0 %v35, 12
    %v951 = vpop.permute.xlu0 %950
    %952 = vrot.lane.b32.xlu0 %v37, 12
    %v953 = vpop.permute.xlu0 %952
    %954 = vrot.lane.b32.xlu0 %v38, 12
    %v955 = vpop.permute.xlu0 %954
    %956 = vrot.lane.b32.xlu0 %v40, 12
    %v957 = vpop.permute.xlu0 %956
    %958 = vrot.lane.b32.xlu0 %v41, 12
    %v959 = vpop.permute.xlu0 %958
    %960 = vrot.lane.b32.xlu0 %v43, 12
    %v961 = vpop.permute.xlu0 %960
    %962 = vrot.lane.b32.xlu0 %v44, 12
    %v963 = vpop.permute.xlu0 %962
    %964 = vrot.lane.b32.xlu0 %v46, 12
    %v965 = vpop.permute.xlu0 %964
    %966 = vrot.lane.b32.xlu0 %v47, 12
    %v967 = vpop.permute.xlu0 %966
    %968 = vrot.lane.b32.xlu0 %v49, 12
    %v969 = vpop.permute.xlu0 %968
    %970 = vrot.lane.b32.xlu0 %v50, 12
    %v971 = vpop.permute.xlu0 %970
    %972 = vrot.lane.b32.xlu0 %v52, 12
    %v973 = vpop.permute.xlu0 %972
    %974 = vrot.lane.b32.xlu0 %v53, 12
    %v975 = vpop.permute.xlu0 %974
    %976 = vrot.lane.b32.xlu0 %v55, 12
    %v977 = vpop.permute.xlu0 %976
    %978 = vrot.lane.b32.xlu0 %v56, 12
    %v979 = vpop.permute.xlu0 %978
    %980 = vrot.lane.b32.xlu0 %v58, 12
    %v981 = vpop.permute.xlu0 %980
    %982 = vrot.lane.b32.xlu0 %v59, 12
    %v983 = vpop.permute.xlu0 %982
    %984 = vrot.lane.b32.xlu0 %v61, 12
    %v985 = vpop.permute.xlu0 %984
    %986 = vrot.lane.b32.xlu0 %v62, 12
    %v987 = vpop.permute.xlu0 %986
    %988 = vrot.lane.b32.xlu0 %v64, 12
    %v989 = vpop.permute.xlu0 %988
    %990 = vrot.lane.b32.xlu0 %v65, 12
    %v991 = vpop.permute.xlu0 %990
    %992 = vrot.lane.b32.xlu0 %v67, 12
    %v993 = vpop.permute.xlu0 %992
    %994 = vrot.lane.b32.xlu0 %v68, 12
    %v995 = vpop.permute.xlu0 %994
    %996 = vrot.lane.b32.xlu0 %v70, 12
    %v997 = vpop.permute.xlu0 %996
    %998 = vrot.lane.b32.xlu0 %v71, 12
    %v999 = vpop.permute.xlu0 %998
    %1000 = vrot.lane.b32.xlu0 %v79, 12
    %v1001 = vpop.permute.xlu0 %1000
    %1002 = vrot.lane.b32.xlu0 %v80, 12
    %v1003 = vpop.permute.xlu0 %1002
    %1004 = vrot.lane.b32.xlu0 %v82, 12
    %v1005 = vpop.permute.xlu0 %1004
    %1006 = vrot.lane.b32.xlu0 %v83, 12
    %v1007 = vpop.permute.xlu0 %1006
    %1008 = vrot.lane.b32.xlu0 %v85, 12
    %v1009 = vpop.permute.xlu0 %1008
    %1010 = vrot.lane.b32.xlu0 %v86, 12
    %v1011 = vpop.permute.xlu0 %1010
    %1012 = vrot.lane.b32.xlu0 %v88, 12
    %v1013 = vpop.permute.xlu0 %1012
    %1014 = vrot.lane.b32.xlu0 %v89, 12
    %v1015 = vpop.permute.xlu0 %1014
    %1016 = vrot.lane.b32.xlu0 %v91, 12
    %v1017 = vpop.permute.xlu0 %1016
    %1018 = vrot.lane.b32.xlu0 %v92, 12
    %v1019 = vpop.permute.xlu0 %1018
    %1020 = vrot.lane.b32.xlu0 %v94, 12
    %v1021 = vpop.permute.xlu0 %1020
    %1022 = vrot.lane.b32.xlu0 %v95, 12
    %v1023 = vpop.permute.xlu0 %1022
    %1024 = vrot.lane.b32.xlu0 %v97, 12
    %v1025 = vpop.permute.xlu0 %1024
    %1026 = vrot.lane.b32.xlu0 %v98, 12
    %v1027 = vpop.permute.xlu0 %1026
    %1028 = vrot.lane.b32.xlu0 %v100, 12
    %v1029 = vpop.permute.xlu0 %1028
    %1030 = vrot.lane.b32.xlu0 %v101, 12
    %v1031 = vpop.permute.xlu0 %1030
    %1032 = vrot.lane.b32.xlu0 %v103, 12
    %v1033 = vpop.permute.xlu0 %1032
    %1034 = vrot.lane.b32.xlu0 %v104, 12
    %v1035 = vpop.permute.xlu0 %1034
    %1036 = vrot.lane.b32.xlu0 %v106, 12
    %v1037 = vpop.permute.xlu0 %1036
    %1038 = vrot.lane.b32.xlu0 %v107, 12
    %v1039 = vpop.permute.xlu0 %1038
    %1040 = vrot.lane.b32.xlu0 %v109, 12
    %v1041 = vpop.permute.xlu0 %1040
    %1042 = vrot.lane.b32.xlu0 %v110, 12
    %v1043 = vpop.permute.xlu0 %1042
    %1044 = vrot.lane.b32.xlu0 %v112, 12
    %v1045 = vpop.permute.xlu0 %1044
    %1046 = vrot.lane.b32.xlu0 %v113, 12
    %v1047 = vpop.permute.xlu0 %1046
    %1048 = vrot.lane.b32.xlu0 %v115, 12
    %v1049 = vpop.permute.xlu0 %1048
    %1050 = vrot.lane.b32.xlu0 %v116, 12
    %v1051 = vpop.permute.xlu0 %1050
    %1052 = vrot.lane.b32.xlu0 %v118, 12
    %v1053 = vpop.permute.xlu0 %1052
    %1054 = vrot.lane.b32.xlu0 %v119, 12
    %v1055 = vpop.permute.xlu0 %1054
    %1056 = vrot.lane.b32.xlu0 %v121, 12
    %v1057 = vpop.permute.xlu0 %1056
    %1058 = vrot.lane.b32.xlu0 %v122, 12
    %v1059 = vpop.permute.xlu0 %1058
    %1060 = vrot.lane.b32.xlu0 %v124, 12
    %v1061 = vpop.permute.xlu0 %1060
    %1062 = vrot.lane.b32.xlu0 %v125, 12
    %v1063 = vpop.permute.xlu0 %1062
    %v1130 = vrot.slane %v70, 1
    %v1131 = vrot.slane %v71, 1
    %v1132 = vsel %vm226, %v1130, %v1131
    %v1133 = vrot.slane %v72, 1
    %v1134 = vsel %vm226, %v1131, %v1133
    %v1135 = vrot.slane %v124, 1
    %v1136 = vrot.slane %v125, 1
    %v1137 = vsel %vm226, %v1135, %v1136
    %v1138 = vrot.slane %v126, 1
    %v1139 = vsel %vm226, %v1136, %v1138
    %1140 = vrot.lane.b32.xlu0 %v234, 16
    %v1141 = vpop.permute.xlu0 %1140
    %1142 = vrot.lane.b32.xlu0 %v236, 16
    %v1143 = vpop.permute.xlu0 %1142
    %1144 = vrot.lane.b32.xlu0 %v239, 16
    %v1145 = vpop.permute.xlu0 %1144
    %1146 = vrot.lane.b32.xlu0 %v241, 16
    %v1147 = vpop.permute.xlu0 %1146
    %1148 = vrot.lane.b32.xlu0 %v244, 16
    %v1149 = vpop.permute.xlu0 %1148
    %1150 = vrot.lane.b32.xlu0 %v246, 16
    %v1151 = vpop.permute.xlu0 %1150
    %1152 = vrot.lane.b32.xlu0 %v249, 16
    %v1153 = vpop.permute.xlu0 %1152
    %1154 = vrot.lane.b32.xlu0 %v251, 16
    %v1155 = vpop.permute.xlu0 %1154
    %1156 = vrot.lane.b32.xlu0 %v254, 16
    %v1157 = vpop.permute.xlu0 %1156
    %1158 = vrot.lane.b32.xlu0 %v256, 16
    %v1159 = vpop.permute.xlu0 %1158
    %1160 = vrot.lane.b32.xlu0 %v259, 16
    %v1161 = vpop.permute.xlu0 %1160
    %1162 = vrot.lane.b32.xlu0 %v261, 16
    %v1163 = vpop.permute.xlu0 %1162
    %1164 = vrot.lane.b32.xlu0 %v264, 16
    %v1165 = vpop.permute.xlu0 %1164
    %1166 = vrot.lane.b32.xlu0 %v266, 16
    %v1167 = vpop.permute.xlu0 %1166
    %1168 = vrot.lane.b32.xlu0 %v269, 16
    %v1169 = vpop.permute.xlu0 %1168
    %1170 = vrot.lane.b32.xlu0 %v271, 16
    %v1171 = vpop.permute.xlu0 %1170
    %1172 = vrot.lane.b32.xlu0 %v274, 16
    %v1173 = vpop.permute.xlu0 %1172
    %1174 = vrot.lane.b32.xlu0 %v276, 16
    %v1175 = vpop.permute.xlu0 %1174
    %1176 = vrot.lane.b32.xlu0 %v279, 16
    %v1177 = vpop.permute.xlu0 %1176
    %1178 = vrot.lane.b32.xlu0 %v281, 16
    %v1179 = vpop.permute.xlu0 %1178
    %1180 = vrot.lane.b32.xlu0 %v284, 16
    %v1181 = vpop.permute.xlu0 %1180
    %1182 = vrot.lane.b32.xlu0 %v286, 16
    %v1183 = vpop.permute.xlu0 %1182
    %1184 = vrot.lane.b32.xlu0 %v289, 16
    %v1185 = vpop.permute.xlu0 %1184
    %1186 = vrot.lane.b32.xlu0 %v291, 16
    %v1187 = vpop.permute.xlu0 %1186
    %1188 = vrot.lane.b32.xlu0 %v294, 16
    %v1189 = vpop.permute.xlu0 %1188
    %1190 = vrot.lane.b32.xlu0 %v296, 16
    %v1191 = vpop.permute.xlu0 %1190
    %1192 = vrot.lane.b32.xlu0 %v299, 16
    %v1193 = vpop.permute.xlu0 %1192
    %1194 = vrot.lane.b32.xlu0 %v301, 16
    %v1195 = vpop.permute.xlu0 %1194
    %1196 = vrot.lane.b32.xlu0 %v304, 16
    %v1197 = vpop.permute.xlu0 %1196
    %1198 = vrot.lane.b32.xlu0 %v306, 16
    %v1199 = vpop.permute.xlu0 %1198
    %1200 = vrot.lane.b32.xlu0 %v1132, 16
    %v1201 = vpop.permute.xlu0 %1200
    %1202 = vrot.lane.b32.xlu0 %v1134, 16
    %v1203 = vpop.permute.xlu0 %1202
    %1204 = vrot.lane.b32.xlu0 %v314, 16
    %v1205 = vpop.permute.xlu0 %1204
    %1206 = vrot.lane.b32.xlu0 %v316, 16
    %v1207 = vpop.permute.xlu0 %1206
    %1208 = vrot.lane.b32.xlu0 %v319, 16
    %v1209 = vpop.permute.xlu0 %1208
    %1210 = vrot.lane.b32.xlu0 %v321, 16
    %v1211 = vpop.permute.xlu0 %1210
    %1212 = vrot.lane.b32.xlu0 %v324, 16
    %v1213 = vpop.permute.xlu0 %1212
    %1214 = vrot.lane.b32.xlu0 %v326, 16
    %v1215 = vpop.permute.xlu0 %1214
    %1216 = vrot.lane.b32.xlu0 %v329, 16
    %v1217 = vpop.permute.xlu0 %1216
    %1218 = vrot.lane.b32.xlu0 %v331, 16
    %v1219 = vpop.permute.xlu0 %1218
    %1220 = vrot.lane.b32.xlu0 %v334, 16
    %v1221 = vpop.permute.xlu0 %1220
    %1222 = vrot.lane.b32.xlu0 %v336, 16
    %v1223 = vpop.permute.xlu0 %1222
    %1224 = vrot.lane.b32.xlu0 %v339, 16
    %v1225 = vpop.permute.xlu0 %1224
    %1226 = vrot.lane.b32.xlu0 %v341, 16
    %v1227 = vpop.permute.xlu0 %1226
    %1228 = vrot.lane.b32.xlu0 %v344, 16
    %v1229 = vpop.permute.xlu0 %1228
    %1230 = vrot.lane.b32.xlu0 %v346, 16
    %v1231 = vpop.permute.xlu0 %1230
    %1232 = vrot.lane.b32.xlu0 %v349, 16
    %v1233 = vpop.permute.xlu0 %1232
    %1234 = vrot.lane.b32.xlu0 %v351, 16
    %v1235 = vpop.permute.xlu0 %1234
    %1236 = vrot.lane.b32.xlu0 %v354, 16
    %v1237 = vpop.permute.xlu0 %1236
    %1238 = vrot.lane.b32.xlu0 %v356, 16
    %v1239 = vpop.permute.xlu0 %1238
    %1240 = vrot.lane.b32.xlu0 %v359, 16
    %v1241 = vpop.permute.xlu0 %1240
    %1242 = vrot.lane.b32.xlu0 %v361, 16
    %v1243 = vpop.permute.xlu0 %1242
    %1244 = vrot.lane.b32.xlu0 %v364, 16
    %v1245 = vpop.permute.xlu0 %1244
    %1246 = vrot.lane.b32.xlu0 %v366, 16
    %v1247 = vpop.permute.xlu0 %1246
    %1248 = vrot.lane.b32.xlu0 %v369, 16
    %v1249 = vpop.permute.xlu0 %1248
    %1250 = vrot.lane.b32.xlu0 %v371, 16
    %v1251 = vpop.permute.xlu0 %1250
    %1252 = vrot.lane.b32.xlu0 %v374, 16
    %v1253 = vpop.permute.xlu0 %1252
    %1254 = vrot.lane.b32.xlu0 %v376, 16
    %v1255 = vpop.permute.xlu0 %1254
    %1256 = vrot.lane.b32.xlu0 %v379, 16
    %v1257 = vpop.permute.xlu0 %1256
    %1258 = vrot.lane.b32.xlu0 %v381, 16
    %v1259 = vpop.permute.xlu0 %1258
    %1260 = vrot.lane.b32.xlu0 %v384, 16
    %v1261 = vpop.permute.xlu0 %1260
    %1262 = vrot.lane.b32.xlu0 %v386, 16
    %v1263 = vpop.permute.xlu0 %1262
    %1264 = vrot.lane.b32.xlu0 %v1137, 16
    %v1265 = vpop.permute.xlu0 %1264
    %1266 = vrot.lane.b32.xlu0 %v1139, 16
    %v1267 = vpop.permute.xlu0 %1266
    %v1332 = vrot.slane %v70, 2
    %v1333 = vrot.slane %v71, 2
    %v1334 = vsel %vm579, %v1332, %v1333
    %v1335 = vrot.slane %v72, 2
    %v1336 = vsel %vm579, %v1333, %v1335
    %v1337 = vrot.slane %v124, 2
    %v1338 = vrot.slane %v125, 2
    %v1339 = vsel %vm579, %v1337, %v1338
    %v1340 = vrot.slane %v126, 2
    %v1341 = vsel %vm579, %v1338, %v1340
    %1342 = vrot.lane.b32.xlu0 %v587, 20
    %v1343 = vpop.permute.xlu0 %1342
    %1344 = vrot.lane.b32.xlu0 %v589, 20
    %v1345 = vpop.permute.xlu0 %1344
    %1346 = vrot.lane.b32.xlu0 %v592, 20
    %v1347 = vpop.permute.xlu0 %1346
    %1348 = vrot.lane.b32.xlu0 %v594, 20
    %v1349 = vpop.permute.xlu0 %1348
    %1350 = vrot.lane.b32.xlu0 %v597, 20
    %v1351 = vpop.permute.xlu0 %1350
    %1352 = vrot.lane.b32.xlu0 %v599, 20
    %v1353 = vpop.permute.xlu0 %1352
    %1354 = vrot.lane.b32.xlu0 %v602, 20
    %v1355 = vpop.permute.xlu0 %1354
    %1356 = vrot.lane.b32.xlu0 %v604, 20
    %v1357 = vpop.permute.xlu0 %1356
    %1358 = vrot.lane.b32.xlu0 %v607, 20
    %v1359 = vpop.permute.xlu0 %1358
    %1360 = vrot.lane.b32.xlu0 %v609, 20
    %v1361 = vpop.permute.xlu0 %1360
    %1362 = vrot.lane.b32.xlu0 %v612, 20
    %v1363 = vpop.permute.xlu0 %1362
    %1364 = vrot.lane.b32.xlu0 %v614, 20
    %v1365 = vpop.permute.xlu0 %1364
    %1366 = vrot.lane.b32.xlu0 %v617, 20
    %v1367 = vpop.permute.xlu0 %1366
    %1368 = vrot.lane.b32.xlu0 %v619, 20
    %v1369 = vpop.permute.xlu0 %1368
    %1370 = vrot.lane.b32.xlu0 %v622, 20
    %v1371 = vpop.permute.xlu0 %1370
    %1372 = vrot.lane.b32.xlu0 %v624, 20
    %v1373 = vpop.permute.xlu0 %1372
    %1374 = vrot.lane.b32.xlu0 %v627, 20
    %v1375 = vpop.permute.xlu0 %1374
    %1376 = vrot.lane.b32.xlu0 %v629, 20
    %v1377 = vpop.permute.xlu0 %1376
    %1378 = vrot.lane.b32.xlu0 %v632, 20
    %v1379 = vpop.permute.xlu0 %1378
    %1380 = vrot.lane.b32.xlu0 %v634, 20
    %v1381 = vpop.permute.xlu0 %1380
    %1382 = vrot.lane.b32.xlu0 %v637, 20
    %v1383 = vpop.permute.xlu0 %1382
    %1384 = vrot.lane.b32.xlu0 %v639, 20
    %v1385 = vpop.permute.xlu0 %1384
    %1386 = vrot.lane.b32.xlu0 %v642, 20
    %v1387 = vpop.permute.xlu0 %1386
    %1388 = vrot.lane.b32.xlu0 %v644, 20
    %v1389 = vpop.permute.xlu0 %1388
    %1390 = vrot.lane.b32.xlu0 %v647, 20
    %v1391 = vpop.permute.xlu0 %1390
    %1392 = vrot.lane.b32.xlu0 %v649, 20
    %v1393 = vpop.permute.xlu0 %1392
    %1394 = vrot.lane.b32.xlu0 %v652, 20
    %v1395 = vpop.permute.xlu0 %1394
    %1396 = vrot.lane.b32.xlu0 %v654, 20
    %v1397 = vpop.permute.xlu0 %1396
    %1398 = vrot.lane.b32.xlu0 %v657, 20
    %v1399 = vpop.permute.xlu0 %1398
    %1400 = vrot.lane.b32.xlu0 %v659, 20
    %v1401 = vpop.permute.xlu0 %1400
    %1402 = vrot.lane.b32.xlu0 %v1334, 20
    %v1403 = vpop.permute.xlu0 %1402
    %1404 = vrot.lane.b32.xlu0 %v1336, 20
    %v1405 = vpop.permute.xlu0 %1404
    %1406 = vrot.lane.b32.xlu0 %v667, 20
    %v1407 = vpop.permute.xlu0 %1406
    %1408 = vrot.lane.b32.xlu0 %v669, 20
    %v1409 = vpop.permute.xlu0 %1408
    %1410 = vrot.lane.b32.xlu0 %v672, 20
    %v1411 = vpop.permute.xlu0 %1410
    %1412 = vrot.lane.b32.xlu0 %v674, 20
    %v1413 = vpop.permute.xlu0 %1412
    %1414 = vrot.lane.b32.xlu0 %v677, 20
    %v1415 = vpop.permute.xlu0 %1414
    %1416 = vrot.lane.b32.xlu0 %v679, 20
    %v1417 = vpop.permute.xlu0 %1416
    %1418 = vrot.lane.b32.xlu0 %v682, 20
    %v1419 = vpop.permute.xlu0 %1418
    %1420 = vrot.lane.b32.xlu0 %v684, 20
    %v1421 = vpop.permute.xlu0 %1420
    %1422 = vrot.lane.b32.xlu0 %v687, 20
    %v1423 = vpop.permute.xlu0 %1422
    %1424 = vrot.lane.b32.xlu0 %v689, 20
    %v1425 = vpop.permute.xlu0 %1424
    %1426 = vrot.lane.b32.xlu0 %v692, 20
    %v1427 = vpop.permute.xlu0 %1426
    %1428 = vrot.lane.b32.xlu0 %v694, 20
    %v1429 = vpop.permute.xlu0 %1428
    %1430 = vrot.lane.b32.xlu0 %v697, 20
    %v1431 = vpop.permute.xlu0 %1430
    %1432 = vrot.lane.b32.xlu0 %v699, 20
    %v1433 = vpop.permute.xlu0 %1432
    %1434 = vrot.lane.b32.xlu0 %v702, 20
    %v1435 = vpop.permute.xlu0 %1434
    %1436 = vrot.lane.b32.xlu0 %v704, 20
    %v1437 = vpop.permute.xlu0 %1436
    %1438 = vrot.lane.b32.xlu0 %v707, 20
    %v1439 = vpop.permute.xlu0 %1438
    %1440 = vrot.lane.b32.xlu0 %v709, 20
    %v1441 = vpop.permute.xlu0 %1440
    %1442 = vrot.lane.b32.xlu0 %v712, 20
    %v1443 = vpop.permute.xlu0 %1442
    %1444 = vrot.lane.b32.xlu0 %v714, 20
    %v1445 = vpop.permute.xlu0 %1444
    %1446 = vrot.lane.b32.xlu0 %v717, 20
    %v1447 = vpop.permute.xlu0 %1446
    %1448 = vrot.lane.b32.xlu0 %v719, 20
    %v1449 = vpop.permute.xlu0 %1448
    %1450 = vrot.lane.b32.xlu0 %v722, 20
    %v1451 = vpop.permute.xlu0 %1450
    %1452 = vrot.lane.b32.xlu0 %v724, 20
    %v1453 = vpop.permute.xlu0 %1452
    %1454 = vrot.lane.b32.xlu0 %v727, 20
    %v1455 = vpop.permute.xlu0 %1454
    %1456 = vrot.lane.b32.xlu0 %v729, 20
    %v1457 = vpop.permute.xlu0 %1456
    %1458 = vrot.lane.b32.xlu0 %v732, 20
    %v1459 = vpop.permute.xlu0 %1458
    %1460 = vrot.lane.b32.xlu0 %v734, 20
    %v1461 = vpop.permute.xlu0 %1460
    %1462 = vrot.lane.b32.xlu0 %v737, 20
    %v1463 = vpop.permute.xlu0 %1462
    %1464 = vrot.lane.b32.xlu0 %v739, 20
    %v1465 = vpop.permute.xlu0 %1464
    %1466 = vrot.lane.b32.xlu0 %v1339, 20
    %v1467 = vpop.permute.xlu0 %1466
    %1468 = vrot.lane.b32.xlu0 %v1341, 20
    %v1469 = vpop.permute.xlu0 %1468
    %1538 = vrot.lane.b32.xlu0 %v28, 24
    %v1539 = vpop.permute.xlu0 %1538
    %1540 = vrot.lane.b32.xlu0 %v29, 24
    %v1541 = vpop.permute.xlu0 %1540
    %1542 = vrot.lane.b32.xlu0 %v31, 24
    %v1543 = vpop.permute.xlu0 %1542
    %1544 = vrot.lane.b32.xlu0 %v32, 24
    %v1545 = vpop.permute.xlu0 %1544
    %1546 = vrot.lane.b32.xlu0 %v34, 24
    %v1547 = vpop.permute.xlu0 %1546
    %1548 = vrot.lane.b32.xlu0 %v35, 24
    %v1549 = vpop.permute.xlu0 %1548
    %1550 = vrot.lane.b32.xlu0 %v37, 24
    %v1551 = vpop.permute.xlu0 %1550
    %1552 = vrot.lane.b32.xlu0 %v38, 24
    %v1553 = vpop.permute.xlu0 %1552
    %1554 = vrot.lane.b32.xlu0 %v40, 24
    %v1555 = vpop.permute.xlu0 %1554
    %1556 = vrot.lane.b32.xlu0 %v41, 24
    %v1557 = vpop.permute.xlu0 %1556
    %1558 = vrot.lane.b32.xlu0 %v43, 24
    %v1559 = vpop.permute.xlu0 %1558
    %1560 = vrot.lane.b32.xlu0 %v44, 24
    %v1561 = vpop.permute.xlu0 %1560
    %1562 = vrot.lane.b32.xlu0 %v46, 24
    %v1563 = vpop.permute.xlu0 %1562
    %1564 = vrot.lane.b32.xlu0 %v47, 24
    %v1565 = vpop.permute.xlu0 %1564
    %1566 = vrot.lane.b32.xlu0 %v49, 24
    %v1567 = vpop.permute.xlu0 %1566
    %1568 = vrot.lane.b32.xlu0 %v50, 24
    %v1569 = vpop.permute.xlu0 %1568
    %1570 = vrot.lane.b32.xlu0 %v52, 24
    %v1571 = vpop.permute.xlu0 %1570
    %1572 = vrot.lane.b32.xlu0 %v53, 24
    %v1573 = vpop.permute.xlu0 %1572
    %1574 = vrot.lane.b32.xlu0 %v55, 24
    %v1575 = vpop.permute.xlu0 %1574
    %1576 = vrot.lane.b32.xlu0 %v56, 24
    %v1577 = vpop.permute.xlu0 %1576
    %1578 = vrot.lane.b32.xlu0 %v58, 24
    %v1579 = vpop.permute.xlu0 %1578
    %1580 = vrot.lane.b32.xlu0 %v59, 24
    %v1581 = vpop.permute.xlu0 %1580
    %1582 = vrot.lane.b32.xlu0 %v61, 24
    %v1583 = vpop.permute.xlu0 %1582
    %1584 = vrot.lane.b32.xlu0 %v62, 24
    %v1585 = vpop.permute.xlu0 %1584
    %1586 = vrot.lane.b32.xlu0 %v64, 24
    %v1587 = vpop.permute.xlu0 %1586
    %1588 = vrot.lane.b32.xlu0 %v65, 24
    %v1589 = vpop.permute.xlu0 %1588
    %1590 = vrot.lane.b32.xlu0 %v67, 24
    %v1591 = vpop.permute.xlu0 %1590
    %1592 = vrot.lane.b32.xlu0 %v68, 24
    %v1593 = vpop.permute.xlu0 %1592
    %1594 = vrot.lane.b32.xlu0 %v70, 24
    %v1595 = vpop.permute.xlu0 %1594
    %1596 = vrot.lane.b32.xlu0 %v71, 24
    %v1597 = vpop.permute.xlu0 %1596
    %1598 = vrot.lane.b32.xlu0 %v73, 24
    %v1599 = vpop.permute.xlu0 %1598
    %1600 = vrot.lane.b32.xlu0 %v74, 24
    %v1601 = vpop.permute.xlu0 %1600
    %1602 = vrot.lane.b32.xlu0 %v82, 24
    %v1603 = vpop.permute.xlu0 %1602
    %1604 = vrot.lane.b32.xlu0 %v83, 24
    %v1605 = vpop.permute.xlu0 %1604
    %1606 = vrot.lane.b32.xlu0 %v85, 24
    %v1607 = vpop.permute.xlu0 %1606
    %1608 = vrot.lane.b32.xlu0 %v86, 24
    %v1609 = vpop.permute.xlu0 %1608
    %1610 = vrot.lane.b32.xlu0 %v88, 24
    %v1611 = vpop.permute.xlu0 %1610
    %1612 = vrot.lane.b32.xlu0 %v89, 24
    %v1613 = vpop.permute.xlu0 %1612
    %1614 = vrot.lane.b32.xlu0 %v91, 24
    %v1615 = vpop.permute.xlu0 %1614
    %1616 = vrot.lane.b32.xlu0 %v92, 24
    %v1617 = vpop.permute.xlu0 %1616
    %1618 = vrot.lane.b32.xlu0 %v94, 24
    %v1619 = vpop.permute.xlu0 %1618
    %1620 = vrot.lane.b32.xlu0 %v95, 24
    %v1621 = vpop.permute.xlu0 %1620
    %1622 = vrot.lane.b32.xlu0 %v97, 24
    %v1623 = vpop.permute.xlu0 %1622
    %1624 = vrot.lane.b32.xlu0 %v98, 24
    %v1625 = vpop.permute.xlu0 %1624
    %1626 = vrot.lane.b32.xlu0 %v100, 24
    %v1627 = vpop.permute.xlu0 %1626
    %1628 = vrot.lane.b32.xlu0 %v101, 24
    %v1629 = vpop.permute.xlu0 %1628
    %1630 = vrot.lane.b32.xlu0 %v103, 24
    %v1631 = vpop.permute.xlu0 %1630
    %1632 = vrot.lane.b32.xlu0 %v104, 24
    %v1633 = vpop.permute.xlu0 %1632
    %1634 = vrot.lane.b32.xlu0 %v106, 24
    %v1635 = vpop.permute.xlu0 %1634
    %1636 = vrot.lane.b32.xlu0 %v107, 24
    %v1637 = vpop.permute.xlu0 %1636
    %1638 = vrot.lane.b32.xlu0 %v109, 24
    %v1639 = vpop.permute.xlu0 %1638
    %1640 = vrot.lane.b32.xlu0 %v110, 24
    %v1641 = vpop.permute.xlu0 %1640
    %1642 = vrot.lane.b32.xlu0 %v112, 24
    %v1643 = vpop.permute.xlu0 %1642
    %1644 = vrot.lane.b32.xlu0 %v113, 24
    %v1645 = vpop.permute.xlu0 %1644
    %1646 = vrot.lane.b32.xlu0 %v115, 24
    %v1647 = vpop.permute.xlu0 %1646
    %1648 = vrot.lane.b32.xlu0 %v116, 24
    %v1649 = vpop.permute.xlu0 %1648
    %1650 = vrot.lane.b32.xlu0 %v118, 24
    %v1651 = vpop.permute.xlu0 %1650
    %1652 = vrot.lane.b32.xlu0 %v119, 24
    %v1653 = vpop.permute.xlu0 %1652
    %1654 = vrot.lane.b32.xlu0 %v121, 24
    %v1655 = vpop.permute.xlu0 %1654
    %1656 = vrot.lane.b32.xlu0 %v122, 24
    %v1657 = vpop.permute.xlu0 %1656
    %1658 = vrot.lane.b32.xlu0 %v124, 24
    %v1659 = vpop.permute.xlu0 %1658
    %1660 = vrot.lane.b32.xlu0 %v125, 24
    %v1661 = vpop.permute.xlu0 %1660
    %1662 = vrot.lane.b32.xlu0 %v127, 24
    %v1663 = vpop.permute.xlu0 %1662
    %1664 = vrot.lane.b32.xlu0 %v128, 24
    %v1665 = vpop.permute.xlu0 %1664
    %v1732 = vrot.slane %v73, 1
    %v1733 = vrot.slane %v74, 1
    %v1734 = vsel %vm226, %v1732, %v1733
    %v1735 = vrot.slane %v75, 1
    %v1736 = vsel %vm226, %v1733, %v1735
    %v1737 = vrot.slane %v127, 1
    %v1738 = vrot.slane %v128, 1
    %v1739 = vsel %vm226, %v1737, %v1738
    %v1740 = vrot.slane %v129, 1
    %v1741 = vsel %vm226, %v1738, %v1740
    %1742 = vrot.lane.b32.xlu0 %v239, 28
    %v1743 = vpop.permute.xlu0 %1742
    %1744 = vrot.lane.b32.xlu0 %v241, 28
    %v1745 = vpop.permute.xlu0 %1744
    %1746 = vrot.lane.b32.xlu0 %v244, 28
    %v1747 = vpop.permute.xlu0 %1746
    %1748 = vrot.lane.b32.xlu0 %v246, 28
    %v1749 = vpop.permute.xlu0 %1748
    %1750 = vrot.lane.b32.xlu0 %v249, 28
    %v1751 = vpop.permute.xlu0 %1750
    %1752 = vrot.lane.b32.xlu0 %v251, 28
    %v1753 = vpop.permute.xlu0 %1752
    %1754 = vrot.lane.b32.xlu0 %v254, 28
    %v1755 = vpop.permute.xlu0 %1754
    %1756 = vrot.lane.b32.xlu0 %v256, 28
    %v1757 = vpop.permute.xlu0 %1756
    %1758 = vrot.lane.b32.xlu0 %v259, 28
    %v1759 = vpop.permute.xlu0 %1758
    %1760 = vrot.lane.b32.xlu0 %v261, 28
    %v1761 = vpop.permute.xlu0 %1760
    %1762 = vrot.lane.b32.xlu0 %v264, 28
    %v1763 = vpop.permute.xlu0 %1762
    %1764 = vrot.lane.b32.xlu0 %v266, 28
    %v1765 = vpop.permute.xlu0 %1764
    %1766 = vrot.lane.b32.xlu0 %v269, 28
    %v1767 = vpop.permute.xlu0 %1766
    %1768 = vrot.lane.b32.xlu0 %v271, 28
    %v1769 = vpop.permute.xlu0 %1768
    %1770 = vrot.lane.b32.xlu0 %v274, 28
    %v1771 = vpop.permute.xlu0 %1770
    %1772 = vrot.lane.b32.xlu0 %v276, 28
    %v1773 = vpop.permute.xlu0 %1772
    %1774 = vrot.lane.b32.xlu0 %v279, 28
    %v1775 = vpop.permute.xlu0 %1774
    %1776 = vrot.lane.b32.xlu0 %v281, 28
    %v1777 = vpop.permute.xlu0 %1776
    %1778 = vrot.lane.b32.xlu0 %v284, 28
    %v1779 = vpop.permute.xlu0 %1778
    %1780 = vrot.lane.b32.xlu0 %v286, 28
    %v1781 = vpop.permute.xlu0 %1780
    %1782 = vrot.lane.b32.xlu0 %v289, 28
    %v1783 = vpop.permute.xlu0 %1782
    %1784 = vrot.lane.b32.xlu0 %v291, 28
    %v1785 = vpop.permute.xlu0 %1784
    %1786 = vrot.lane.b32.xlu0 %v294, 28
    %v1787 = vpop.permute.xlu0 %1786
    %1788 = vrot.lane.b32.xlu0 %v296, 28
    %v1789 = vpop.permute.xlu0 %1788
    %1790 = vrot.lane.b32.xlu0 %v299, 28
    %v1791 = vpop.permute.xlu0 %1790
    %1792 = vrot.lane.b32.xlu0 %v301, 28
    %v1793 = vpop.permute.xlu0 %1792
    %1794 = vrot.lane.b32.xlu0 %v304, 28
    %v1795 = vpop.permute.xlu0 %1794
    %1796 = vrot.lane.b32.xlu0 %v306, 28
    %v1797 = vpop.permute.xlu0 %1796
    %1798 = vrot.lane.b32.xlu0 %v1132, 28
    %v1799 = vpop.permute.xlu0 %1798
    %1800 = vrot.lane.b32.xlu0 %v1134, 28
    %v1801 = vpop.permute.xlu0 %1800
    %1802 = vrot.lane.b32.xlu0 %v1734, 28
    %v1803 = vpop.permute.xlu0 %1802
    %1804 = vrot.lane.b32.xlu0 %v1736, 28
    %v1805 = vpop.permute.xlu0 %1804
    %1806 = vrot.lane.b32.xlu0 %v319, 28
    %v1807 = vpop.permute.xlu0 %1806
    %1808 = vrot.lane.b32.xlu0 %v321, 28
    %v1809 = vpop.permute.xlu0 %1808
    %1810 = vrot.lane.b32.xlu0 %v324, 28
    %v1811 = vpop.permute.xlu0 %1810
    %1812 = vrot.lane.b32.xlu0 %v326, 28
    %v1813 = vpop.permute.xlu0 %1812
    %1814 = vrot.lane.b32.xlu0 %v329, 28
    %v1815 = vpop.permute.xlu0 %1814
    %1816 = vrot.lane.b32.xlu0 %v331, 28
    %v1817 = vpop.permute.xlu0 %1816
    %1818 = vrot.lane.b32.xlu0 %v334, 28
    %v1819 = vpop.permute.xlu0 %1818
    %1820 = vrot.lane.b32.xlu0 %v336, 28
    %v1821 = vpop.permute.xlu0 %1820
    %1822 = vrot.lane.b32.xlu0 %v339, 28
    %v1823 = vpop.permute.xlu0 %1822
    %1824 = vrot.lane.b32.xlu0 %v341, 28
    %v1825 = vpop.permute.xlu0 %1824
    %1826 = vrot.lane.b32.xlu0 %v344, 28
    %v1827 = vpop.permute.xlu0 %1826
    %1828 = vrot.lane.b32.xlu0 %v346, 28
    %v1829 = vpop.permute.xlu0 %1828
    %1830 = vrot.lane.b32.xlu0 %v349, 28
    %v1831 = vpop.permute.xlu0 %1830
    %1832 = vrot.lane.b32.xlu0 %v351, 28
    %v1833 = vpop.permute.xlu0 %1832
    %1834 = vrot.lane.b32.xlu0 %v354, 28
    %v1835 = vpop.permute.xlu0 %1834
    %1836 = vrot.lane.b32.xlu0 %v356, 28
    %v1837 = vpop.permute.xlu0 %1836
    %1838 = vrot.lane.b32.xlu0 %v359, 28
    %v1839 = vpop.permute.xlu0 %1838
    %1840 = vrot.lane.b32.xlu0 %v361, 28
    %v1841 = vpop.permute.xlu0 %1840
    %1842 = vrot.lane.b32.xlu0 %v364, 28
    %v1843 = vpop.permute.xlu0 %1842
    %1844 = vrot.lane.b32.xlu0 %v366, 28
    %v1845 = vpop.permute.xlu0 %1844
    %1846 = vrot.lane.b32.xlu0 %v369, 28
    %v1847 = vpop.permute.xlu0 %1846
    %1848 = vrot.lane.b32.xlu0 %v371, 28
    %v1849 = vpop.permute.xlu0 %1848
    %1850 = vrot.lane.b32.xlu0 %v374, 28
    %v1851 = vpop.permute.xlu0 %1850
    %1852 = vrot.lane.b32.xlu0 %v376, 28
    %v1853 = vpop.permute.xlu0 %1852
    %1854 = vrot.lane.b32.xlu0 %v379, 28
    %v1855 = vpop.permute.xlu0 %1854
    %1856 = vrot.lane.b32.xlu0 %v381, 28
    %v1857 = vpop.permute.xlu0 %1856
    %1858 = vrot.lane.b32.xlu0 %v384, 28
    %v1859 = vpop.permute.xlu0 %1858
    %1860 = vrot.lane.b32.xlu0 %v386, 28
    %v1861 = vpop.permute.xlu0 %1860
    %1862 = vrot.lane.b32.xlu0 %v1137, 28
    %v1863 = vpop.permute.xlu0 %1862
    %1864 = vrot.lane.b32.xlu0 %v1139, 28
    %v1865 = vpop.permute.xlu0 %1864
    %1866 = vrot.lane.b32.xlu0 %v1739, 28
    %v1867 = vpop.permute.xlu0 %1866
    %1868 = vrot.lane.b32.xlu0 %v1741, 28
    %v1869 = vpop.permute.xlu0 %1868
    %v1934 = vrot.slane %v73, 2
    %v1935 = vrot.slane %v74, 2
    %v1936 = vsel %vm579, %v1934, %v1935
    %v1937 = vrot.slane %v75, 2
    %v1938 = vsel %vm579, %v1935, %v1937
    %v1939 = vrot.slane %v127, 2
    %v1940 = vrot.slane %v128, 2
    %v1941 = vsel %vm579, %v1939, %v1940
    %v1942 = vrot.slane %v129, 2
    %v1943 = vsel %vm579, %v1940, %v1942
    %1944 = vrot.lane.b32.xlu0 %v592, 32
    %v1945 = vpop.permute.xlu0 %1944
    %1946 = vrot.lane.b32.xlu0 %v594, 32
    %v1947 = vpop.permute.xlu0 %1946
    %1948 = vrot.lane.b32.xlu0 %v597, 32
    %v1949 = vpop.permute.xlu0 %1948
    %1950 = vrot.lane.b32.xlu0 %v599, 32
    %v1951 = vpop.permute.xlu0 %1950
    %1952 = vrot.lane.b32.xlu0 %v602, 32
    %v1953 = vpop.permute.xlu0 %1952
    %1954 = vrot.lane.b32.xlu0 %v604, 32
    %v1955 = vpop.permute.xlu0 %1954
    %1956 = vrot.lane.b32.xlu0 %v607, 32
    %v1957 = vpop.permute.xlu0 %1956
    %1958 = vrot.lane.b32.xlu0 %v609, 32
    %v1959 = vpop.permute.xlu0 %1958
    %1960 = vrot.lane.b32.xlu0 %v612, 32
    %v1961 = vpop.permute.xlu0 %1960
    %1962 = vrot.lane.b32.xlu0 %v614, 32
    %v1963 = vpop.permute.xlu0 %1962
    %1964 = vrot.lane.b32.xlu0 %v617, 32
    %v1965 = vpop.permute.xlu0 %1964
    %1966 = vrot.lane.b32.xlu0 %v619, 32
    %v1967 = vpop.permute.xlu0 %1966
    %1968 = vrot.lane.b32.xlu0 %v622, 32
    %v1969 = vpop.permute.xlu0 %1968
    %1970 = vrot.lane.b32.xlu0 %v624, 32
    %v1971 = vpop.permute.xlu0 %1970
    %1972 = vrot.lane.b32.xlu0 %v627, 32
    %v1973 = vpop.permute.xlu0 %1972
    %1974 = vrot.lane.b32.xlu0 %v629, 32
    %v1975 = vpop.permute.xlu0 %1974
    %1976 = vrot.lane.b32.xlu0 %v632, 32
    %v1977 = vpop.permute.xlu0 %1976
    %1978 = vrot.lane.b32.xlu0 %v634, 32
    %v1979 = vpop.permute.xlu0 %1978
    %1980 = vrot.lane.b32.xlu0 %v637, 32
    %v1981 = vpop.permute.xlu0 %1980
    %1982 = vrot.lane.b32.xlu0 %v639, 32
    %v1983 = vpop.permute.xlu0 %1982
    %1984 = vrot.lane.b32.xlu0 %v642, 32
    %v1985 = vpop.permute.xlu0 %1984
    %1986 = vrot.lane.b32.xlu0 %v644, 32
    %v1987 = vpop.permute.xlu0 %1986
    %1988 = vrot.lane.b32.xlu0 %v647, 32
    %v1989 = vpop.permute.xlu0 %1988
    %1990 = vrot.lane.b32.xlu0 %v649, 32
    %v1991 = vpop.permute.xlu0 %1990
    %1992 = vrot.lane.b32.xlu0 %v652, 32
    %v1993 = vpop.permute.xlu0 %1992
    %1994 = vrot.lane.b32.xlu0 %v654, 32
    %v1995 = vpop.permute.xlu0 %1994
    %1996 = vrot.lane.b32.xlu0 %v657, 32
    %v1997 = vpop.permute.xlu0 %1996
    %1998 = vrot.lane.b32.xlu0 %v659, 32
    %v1999 = vpop.permute.xlu0 %1998
    %2000 = vrot.lane.b32.xlu0 %v1334, 32
    %v2001 = vpop.permute.xlu0 %2000
    %2002 = vrot.lane.b32.xlu0 %v1336, 32
    %v2003 = vpop.permute.xlu0 %2002
    %2004 = vrot.lane.b32.xlu0 %v1936, 32
    %v2005 = vpop.permute.xlu0 %2004
    %2006 = vrot.lane.b32.xlu0 %v1938, 32
    %v2007 = vpop.permute.xlu0 %2006
    %2008 = vrot.lane.b32.xlu0 %v672, 32
    %v2009 = vpop.permute.xlu0 %2008
    %2010 = vrot.lane.b32.xlu0 %v674, 32
    %v2011 = vpop.permute.xlu0 %2010
    %2012 = vrot.lane.b32.xlu0 %v677, 32
    %v2013 = vpop.permute.xlu0 %2012
    %2014 = vrot.lane.b32.xlu0 %v679, 32
    %v2015 = vpop.permute.xlu0 %2014
    %2016 = vrot.lane.b32.xlu0 %v682, 32
    %v2017 = vpop.permute.xlu0 %2016
    %2018 = vrot.lane.b32.xlu0 %v684, 32
    %v2019 = vpop.permute.xlu0 %2018
    %2020 = vrot.lane.b32.xlu0 %v687, 32
    %v2021 = vpop.permute.xlu0 %2020
    %2022 = vrot.lane.b32.xlu0 %v689, 32
    %v2023 = vpop.permute.xlu0 %2022
    %2024 = vrot.lane.b32.xlu0 %v692, 32
    %v2025 = vpop.permute.xlu0 %2024
    %2026 = vrot.lane.b32.xlu0 %v694, 32
    %v2027 = vpop.permute.xlu0 %2026
    %2028 = vrot.lane.b32.xlu0 %v697, 32
    %v2029 = vpop.permute.xlu0 %2028
    %2030 = vrot.lane.b32.xlu0 %v699, 32
    %v2031 = vpop.permute.xlu0 %2030
    %2032 = vrot.lane.b32.xlu0 %v702, 32
    %v2033 = vpop.permute.xlu0 %2032
    %2034 = vrot.lane.b32.xlu0 %v704, 32
    %v2035 = vpop.permute.xlu0 %2034
    %2036 = vrot.lane.b32.xlu0 %v707, 32
    %v2037 = vpop.permute.xlu0 %2036
    %2038 = vrot.lane.b32.xlu0 %v709, 32
    %v2039 = vpop.permute.xlu0 %2038
    %2040 = vrot.lane.b32.xlu0 %v712, 32
    %v2041 = vpop.permute.xlu0 %2040
    %2042 = vrot.lane.b32.xlu0 %v714, 32
    %v2043 = vpop.permute.xlu0 %2042
    %2044 = vrot.lane.b32.xlu0 %v717, 32
    %v2045 = vpop.permute.xlu0 %2044
    %2046 = vrot.lane.b32.xlu0 %v719, 32
    %v2047 = vpop.permute.xlu0 %2046
    %2048 = vrot.lane.b32.xlu0 %v722, 32
    %v2049 = vpop.permute.xlu0 %2048
    %2050 = vrot.lane.b32.xlu0 %v724, 32
    %v2051 = vpop.permute.xlu0 %2050
    %2052 = vrot.lane.b32.xlu0 %v727, 32
    %v2053 = vpop.permute.xlu0 %2052
    %2054 = vrot.lane.b32.xlu0 %v729, 32
    %v2055 = vpop.permute.xlu0 %2054
    %2056 = vrot.lane.b32.xlu0 %v732, 32
    %v2057 = vpop.permute.xlu0 %2056
    %2058 = vrot.lane.b32.xlu0 %v734, 32
    %v2059 = vpop.permute.xlu0 %2058
    %2060 = vrot.lane.b32.xlu0 %v737, 32
    %v2061 = vpop.permute.xlu0 %2060
    %2062 = vrot.lane.b32.xlu0 %v739, 32
    %v2063 = vpop.permute.xlu0 %2062
    %2064 = vrot.lane.b32.xlu0 %v1339, 32
    %v2065 = vpop.permute.xlu0 %2064
    %2066 = vrot.lane.b32.xlu0 %v1341, 32
    %v2067 = vpop.permute.xlu0 %2066
    %2068 = vrot.lane.b32.xlu0 %v1941, 32
    %v2069 = vpop.permute.xlu0 %2068
    %2070 = vrot.lane.b32.xlu0 %v1943, 32
    %v2071 = vpop.permute.xlu0 %2070
    %vm2136 = vcmask 31744
    %v2137 = vsel %vm2136, %v22, %v388
    %v2138 = vsel %vm2136, %v23, %v390
    %v2139 = vsel %vm2136, %v25, %v392
    %v2140 = vsel %vm2136, %v26, %v394
    %v2141 = vsel %vm2136, %v28, %v396
    %v2142 = vsel %vm2136, %v29, %v398
    %v2143 = vsel %vm2136, %v31, %v400
    %v2144 = vsel %vm2136, %v32, %v402
    %v2145 = vsel %vm2136, %v34, %v404
    %v2146 = vsel %vm2136, %v35, %v406
    %v2147 = vsel %vm2136, %v37, %v408
    %v2148 = vsel %vm2136, %v38, %v410
    %v2149 = vsel %vm2136, %v40, %v412
    %v2150 = vsel %vm2136, %v41, %v414
    %v2151 = vsel %vm2136, %v43, %v416
    %v2152 = vsel %vm2136, %v44, %v418
    %v2153 = vsel %vm2136, %v46, %v420
    %v2154 = vsel %vm2136, %v47, %v422
    %v2155 = vsel %vm2136, %v49, %v424
    %v2156 = vsel %vm2136, %v50, %v426
    %v2157 = vsel %vm2136, %v52, %v428
    %v2158 = vsel %vm2136, %v53, %v430
    %v2159 = vsel %vm2136, %v55, %v432
    %v2160 = vsel %vm2136, %v56, %v434
    %v2161 = vsel %vm2136, %v58, %v436
    %v2162 = vsel %vm2136, %v59, %v438
    %v2163 = vsel %vm2136, %v61, %v440
    %v2164 = vsel %vm2136, %v62, %v442
    %v2165 = vsel %vm2136, %v64, %v444
    %v2166 = vsel %vm2136, %v65, %v446
    %v2167 = vsel %vm2136, %v67, %v448
    %v2168 = vsel %vm2136, %v68, %v450
    %v2169 = vsel %vm2136, %v76, %v452
    %v2170 = vsel %vm2136, %v77, %v454
    %v2171 = vsel %vm2136, %v79, %v456
    %v2172 = vsel %vm2136, %v80, %v458
    %v2173 = vsel %vm2136, %v82, %v460
    %v2174 = vsel %vm2136, %v83, %v462
    %v2175 = vsel %vm2136, %v85, %v464
    %v2176 = vsel %vm2136, %v86, %v466
    %v2177 = vsel %vm2136, %v88, %v468
    %v2178 = vsel %vm2136, %v89, %v470
    %v2179 = vsel %vm2136, %v91, %v472
    %v2180 = vsel %vm2136, %v92, %v474
    %v2181 = vsel %vm2136, %v94, %v476
    %v2182 = vsel %vm2136, %v95, %v478
    %v2183 = vsel %vm2136, %v97, %v480
    %v2184 = vsel %vm2136, %v98, %v482
    %v2185 = vsel %vm2136, %v100, %v484
    %v2186 = vsel %vm2136, %v101, %v486
    %v2187 = vsel %vm2136, %v103, %v488
    %v2188 = vsel %vm2136, %v104, %v490
    %v2189 = vsel %vm2136, %v106, %v492
    %v2190 = vsel %vm2136, %v107, %v494
    %v2191 = vsel %vm2136, %v109, %v496
    %v2192 = vsel %vm2136, %v110, %v498
    %v2193 = vsel %vm2136, %v112, %v500
    %v2194 = vsel %vm2136, %v113, %v502
    %v2195 = vsel %vm2136, %v115, %v504
    %v2196 = vsel %vm2136, %v116, %v506
    %v2197 = vsel %vm2136, %v118, %v508
    %v2198 = vsel %vm2136, %v119, %v510
    %v2199 = vsel %vm2136, %v121, %v512
    %v2200 = vsel %vm2136, %v122, %v514
    %vm2201 = vcmask 64512
    %v2202 = vsel %vm2201, %v2137, %v741
    %v2203 = vsel %vm2201, %v2138, %v743
    %v2204 = vsel %vm2201, %v2139, %v745
    %v2205 = vsel %vm2201, %v2140, %v747
    %v2206 = vsel %vm2201, %v2141, %v749
    %v2207 = vsel %vm2201, %v2142, %v751
    %v2208 = vsel %vm2201, %v2143, %v753
    %v2209 = vsel %vm2201, %v2144, %v755
    %v2210 = vsel %vm2201, %v2145, %v757
    %v2211 = vsel %vm2201, %v2146, %v759
    %v2212 = vsel %vm2201, %v2147, %v761
    %v2213 = vsel %vm2201, %v2148, %v763
    %v2214 = vsel %vm2201, %v2149, %v765
    %v2215 = vsel %vm2201, %v2150, %v767
    %v2216 = vsel %vm2201, %v2151, %v769
    %v2217 = vsel %vm2201, %v2152, %v771
    %v2218 = vsel %vm2201, %v2153, %v773
    %v2219 = vsel %vm2201, %v2154, %v775
    %v2220 = vsel %vm2201, %v2155, %v777
    %v2221 = vsel %vm2201, %v2156, %v779
    %v2222 = vsel %vm2201, %v2157, %v781
    %v2223 = vsel %vm2201, %v2158, %v783
    %v2224 = vsel %vm2201, %v2159, %v785
    %v2225 = vsel %vm2201, %v2160, %v787
    %v2226 = vsel %vm2201, %v2161, %v789
    %v2227 = vsel %vm2201, %v2162, %v791
    %v2228 = vsel %vm2201, %v2163, %v793
    %v2229 = vsel %vm2201, %v2164, %v795
    %v2230 = vsel %vm2201, %v2165, %v797
    %v2231 = vsel %vm2201, %v2166, %v799
    %v2232 = vsel %vm2201, %v2167, %v801
    %v2233 = vsel %vm2201, %v2168, %v803
    %v2234 = vsel %vm2201, %v2169, %v805
    %v2235 = vsel %vm2201, %v2170, %v807
    %v2236 = vsel %vm2201, %v2171, %v809
    %v2237 = vsel %vm2201, %v2172, %v811
    %v2238 = vsel %vm2201, %v2173, %v813
    %v2239 = vsel %vm2201, %v2174, %v815
    %v2240 = vsel %vm2201, %v2175, %v817
    %v2241 = vsel %vm2201, %v2176, %v819
    %v2242 = vsel %vm2201, %v2177, %v821
    %v2243 = vsel %vm2201, %v2178, %v823
    %v2244 = vsel %vm2201, %v2179, %v825
    %v2245 = vsel %vm2201, %v2180, %v827
    %v2246 = vsel %vm2201, %v2181, %v829
    %v2247 = vsel %vm2201, %v2182, %v831
    %v2248 = vsel %vm2201, %v2183, %v833
    %v2249 = vsel %vm2201, %v2184, %v835
    %v2250 = vsel %vm2201, %v2185, %v837
    %v2251 = vsel %vm2201, %v2186, %v839
    %v2252 = vsel %vm2201, %v2187, %v841
    %v2253 = vsel %vm2201, %v2188, %v843
    %v2254 = vsel %vm2201, %v2189, %v845
    %v2255 = vsel %vm2201, %v2190, %v847
    %v2256 = vsel %vm2201, %v2191, %v849
    %v2257 = vsel %vm2201, %v2192, %v851
    %v2258 = vsel %vm2201, %v2193, %v853
    %v2259 = vsel %vm2201, %v2194, %v855
    %v2260 = vsel %vm2201, %v2195, %v857
    %v2261 = vsel %vm2201, %v2196, %v859
    %v2262 = vsel %vm2201, %v2197, %v861
    %v2263 = vsel %vm2201, %v2198, %v863
    %v2264 = vsel %vm2201, %v2199, %v865
    %v2265 = vsel %vm2201, %v2200, %v867
    %vm2266 = vcmask 97280
    %v2267 = vsel %vm2266, %v2202, %v937
    %v2268 = vsel %vm2266, %v2203, %v939
    %v2269 = vsel %vm2266, %v2204, %v941
    %v2270 = vsel %vm2266, %v2205, %v943
    %v2271 = vsel %vm2266, %v2206, %v945
    %v2272 = vsel %vm2266, %v2207, %v947
    %v2273 = vsel %vm2266, %v2208, %v949
    %v2274 = vsel %vm2266, %v2209, %v951
    %v2275 = vsel %vm2266, %v2210, %v953
    %v2276 = vsel %vm2266, %v2211, %v955
    %v2277 = vsel %vm2266, %v2212, %v957
    %v2278 = vsel %vm2266, %v2213, %v959
    %v2279 = vsel %vm2266, %v2214, %v961
    %v2280 = vsel %vm2266, %v2215, %v963
    %v2281 = vsel %vm2266, %v2216, %v965
    %v2282 = vsel %vm2266, %v2217, %v967
    %v2283 = vsel %vm2266, %v2218, %v969
    %v2284 = vsel %vm2266, %v2219, %v971
    %v2285 = vsel %vm2266, %v2220, %v973
    %v2286 = vsel %vm2266, %v2221, %v975
    %v2287 = vsel %vm2266, %v2222, %v977
    %v2288 = vsel %vm2266, %v2223, %v979
    %v2289 = vsel %vm2266, %v2224, %v981
    %v2290 = vsel %vm2266, %v2225, %v983
    %v2291 = vsel %vm2266, %v2226, %v985
    %v2292 = vsel %vm2266, %v2227, %v987
    %v2293 = vsel %vm2266, %v2228, %v989
    %v2294 = vsel %vm2266, %v2229, %v991
    %v2295 = vsel %vm2266, %v2230, %v993
    %v2296 = vsel %vm2266, %v2231, %v995
    %v2297 = vsel %vm2266, %v2232, %v997
    %v2298 = vsel %vm2266, %v2233, %v999
    %v2299 = vsel %vm2266, %v2234, %v1001
    %v2300 = vsel %vm2266, %v2235, %v1003
    %v2301 = vsel %vm2266, %v2236, %v1005
    %v2302 = vsel %vm2266, %v2237, %v1007
    %v2303 = vsel %vm2266, %v2238, %v1009
    %v2304 = vsel %vm2266, %v2239, %v1011
    %v2305 = vsel %vm2266, %v2240, %v1013
    %v2306 = vsel %vm2266, %v2241, %v1015
    %v2307 = vsel %vm2266, %v2242, %v1017
    %v2308 = vsel %vm2266, %v2243, %v1019
    %v2309 = vsel %vm2266, %v2244, %v1021
    %v2310 = vsel %vm2266, %v2245, %v1023
    %v2311 = vsel %vm2266, %v2246, %v1025
    %v2312 = vsel %vm2266, %v2247, %v1027
    %v2313 = vsel %vm2266, %v2248, %v1029
    %v2314 = vsel %vm2266, %v2249, %v1031
    %v2315 = vsel %vm2266, %v2250, %v1033
    %v2316 = vsel %vm2266, %v2251, %v1035
    %v2317 = vsel %vm2266, %v2252, %v1037
    %v2318 = vsel %vm2266, %v2253, %v1039
    %v2319 = vsel %vm2266, %v2254, %v1041
    %v2320 = vsel %vm2266, %v2255, %v1043
    %v2321 = vsel %vm2266, %v2256, %v1045
    %v2322 = vsel %vm2266, %v2257, %v1047
    %v2323 = vsel %vm2266, %v2258, %v1049
    %v2324 = vsel %vm2266, %v2259, %v1051
    %v2325 = vsel %vm2266, %v2260, %v1053
    %v2326 = vsel %vm2266, %v2261, %v1055
    %v2327 = vsel %vm2266, %v2262, %v1057
    %v2328 = vsel %vm2266, %v2263, %v1059
    %v2329 = vsel %vm2266, %v2264, %v1061
    %v2330 = vsel %vm2266, %v2265, %v1063
    %vm2331 = vcmask 130048
    %v2332 = vsel %vm2331, %v2267, %v1141
    %v2333 = vsel %vm2331, %v2268, %v1143
    %v2334 = vsel %vm2331, %v2269, %v1145
    %v2335 = vsel %vm2331, %v2270, %v1147
    %v2336 = vsel %vm2331, %v2271, %v1149
    %v2337 = vsel %vm2331, %v2272, %v1151
    %v2338 = vsel %vm2331, %v2273, %v1153
    %v2339 = vsel %vm2331, %v2274, %v1155
    %v2340 = vsel %vm2331, %v2275, %v1157
    %v2341 = vsel %vm2331, %v2276, %v1159
    %v2342 = vsel %vm2331, %v2277, %v1161
    %v2343 = vsel %vm2331, %v2278, %v1163
    %v2344 = vsel %vm2331, %v2279, %v1165
    %v2345 = vsel %vm2331, %v2280, %v1167
    %v2346 = vsel %vm2331, %v2281, %v1169
    %v2347 = vsel %vm2331, %v2282, %v1171
    %v2348 = vsel %vm2331, %v2283, %v1173
    %v2349 = vsel %vm2331, %v2284, %v1175
    %v2350 = vsel %vm2331, %v2285, %v1177
    %v2351 = vsel %vm2331, %v2286, %v1179
    %v2352 = vsel %vm2331, %v2287, %v1181
    %v2353 = vsel %vm2331, %v2288, %v1183
    %v2354 = vsel %vm2331, %v2289, %v1185
    %v2355 = vsel %vm2331, %v2290, %v1187
    %v2356 = vsel %vm2331, %v2291, %v1189
    %v2357 = vsel %vm2331, %v2292, %v1191
    %v2358 = vsel %vm2331, %v2293, %v1193
    %v2359 = vsel %vm2331, %v2294, %v1195
    %v2360 = vsel %vm2331, %v2295, %v1197
    %v2361 = vsel %vm2331, %v2296, %v1199
    %v2362 = vsel %vm2331, %v2297, %v1201
    %v2363 = vsel %vm2331, %v2298, %v1203
    %v2364 = vsel %vm2331, %v2299, %v1205
    %v2365 = vsel %vm2331, %v2300, %v1207
    %v2366 = vsel %vm2331, %v2301, %v1209
    %v2367 = vsel %vm2331, %v2302, %v1211
    %v2368 = vsel %vm2331, %v2303, %v1213
    %v2369 = vsel %vm2331, %v2304, %v1215
    %v2370 = vsel %vm2331, %v2305, %v1217
    %v2371 = vsel %vm2331, %v2306, %v1219
    %v2372 = vsel %vm2331, %v2307, %v1221
    %v2373 = vsel %vm2331, %v2308, %v1223
    %v2374 = vsel %vm2331, %v2309, %v1225
    %v2375 = vsel %vm2331, %v2310, %v1227
    %v2376 = vsel %vm2331, %v2311, %v1229
    %v2377 = vsel %vm2331, %v2312, %v1231
    %v2378 = vsel %vm2331, %v2313, %v1233
    %v2379 = vsel %vm2331, %v2314, %v1235
    %v2380 = vsel %vm2331, %v2315, %v1237
    %v2381 = vsel %vm2331, %v2316, %v1239
    %v2382 = vsel %vm2331, %v2317, %v1241
    %v2383 = vsel %vm2331, %v2318, %v1243
    %v2384 = vsel %vm2331, %v2319, %v1245
    %v2385 = vsel %vm2331, %v2320, %v1247
    %v2386 = vsel %vm2331, %v2321, %v1249
    %v2387 = vsel %vm2331, %v2322, %v1251
    %v2388 = vsel %vm2331, %v2323, %v1253
    %v2389 = vsel %vm2331, %v2324, %v1255
    %v2390 = vsel %vm2331, %v2325, %v1257
    %v2391 = vsel %vm2331, %v2326, %v1259
    %v2392 = vsel %vm2331, %v2327, %v1261
    %v2393 = vsel %vm2331, %v2328, %v1263
    %v2394 = vsel %vm2331, %v2329, %v1265
    %v2395 = vsel %vm2331, %v2330, %v1267
    %vm2396 = vcmask 162816
    %v2397 = vsel %vm2396, %v2332, %v1343
    %v2398 = vsel %vm2396, %v2333, %v1345
    %v2399 = vsel %vm2396, %v2334, %v1347
    %v2400 = vsel %vm2396, %v2335, %v1349
    %v2401 = vsel %vm2396, %v2336, %v1351
    %v2402 = vsel %vm2396, %v2337, %v1353
    %v2403 = vsel %vm2396, %v2338, %v1355
    %v2404 = vsel %vm2396, %v2339, %v1357
    %v2405 = vsel %vm2396, %v2340, %v1359
    %v2406 = vsel %vm2396, %v2341, %v1361
    %v2407 = vsel %vm2396, %v2342, %v1363
    %v2408 = vsel %vm2396, %v2343, %v1365
    %v2409 = vsel %vm2396, %v2344, %v1367
    %v2410 = vsel %vm2396, %v2345, %v1369
    %v2411 = vsel %vm2396, %v2346, %v1371
    %v2412 = vsel %vm2396, %v2347, %v1373
    %v2413 = vsel %vm2396, %v2348, %v1375
    %v2414 = vsel %vm2396, %v2349, %v1377
    %v2415 = vsel %vm2396, %v2350, %v1379
    %v2416 = vsel %vm2396, %v2351, %v1381
    %v2417 = vsel %vm2396, %v2352, %v1383
    %v2418 = vsel %vm2396, %v2353, %v1385
    %v2419 = vsel %vm2396, %v2354, %v1387
    %v2420 = vsel %vm2396, %v2355, %v1389
    %v2421 = vsel %vm2396, %v2356, %v1391
    %v2422 = vsel %vm2396, %v2357, %v1393
    %v2423 = vsel %vm2396, %v2358, %v1395
    %v2424 = vsel %vm2396, %v2359, %v1397
    %v2425 = vsel %vm2396, %v2360, %v1399
    %v2426 = vsel %vm2396, %v2361, %v1401
    %v2427 = vsel %vm2396, %v2362, %v1403
    %v2428 = vsel %vm2396, %v2363, %v1405
    %v2429 = vsel %vm2396, %v2364, %v1407
    %v2430 = vsel %vm2396, %v2365, %v1409
    %v2431 = vsel %vm2396, %v2366, %v1411
    %v2432 = vsel %vm2396, %v2367, %v1413
    %v2433 = vsel %vm2396, %v2368, %v1415
    %v2434 = vsel %vm2396, %v2369, %v1417
    %v2435 = vsel %vm2396, %v2370, %v1419
    %v2436 = vsel %vm2396, %v2371, %v1421
    %v2437 = vsel %vm2396, %v2372, %v1423
    %v2438 = vsel %vm2396, %v2373, %v1425
    %v2439 = vsel %vm2396, %v2374, %v1427
    %v2440 = vsel %vm2396, %v2375, %v1429
    %v2441 = vsel %vm2396, %v2376, %v1431
    %v2442 = vsel %vm2396, %v2377, %v1433
    %v2443 = vsel %vm2396, %v2378, %v1435
    %v2444 = vsel %vm2396, %v2379, %v1437
    %v2445 = vsel %vm2396, %v2380, %v1439
    %v2446 = vsel %vm2396, %v2381, %v1441
    %v2447 = vsel %vm2396, %v2382, %v1443
    %v2448 = vsel %vm2396, %v2383, %v1445
    %v2449 = vsel %vm2396, %v2384, %v1447
    %v2450 = vsel %vm2396, %v2385, %v1449
    %v2451 = vsel %vm2396, %v2386, %v1451
    %v2452 = vsel %vm2396, %v2387, %v1453
    %v2453 = vsel %vm2396, %v2388, %v1455
    %v2454 = vsel %vm2396, %v2389, %v1457
    %v2455 = vsel %vm2396, %v2390, %v1459
    %v2456 = vsel %vm2396, %v2391, %v1461
    %v2457 = vsel %vm2396, %v2392, %v1463
    %v2458 = vsel %vm2396, %v2393, %v1465
    %v2459 = vsel %vm2396, %v2394, %v1467
    %v2460 = vsel %vm2396, %v2395, %v1469
    %vm2461 = vcmask 195584
    %v2462 = vsel %vm2461, %v2397, %v1539
    %v2463 = vsel %vm2461, %v2398, %v1541
    %v2464 = vsel %vm2461, %v2399, %v1543
    %v2465 = vsel %vm2461, %v2400, %v1545
    %v2466 = vsel %vm2461, %v2401, %v1547
    %v2467 = vsel %vm2461, %v2402, %v1549
    %v2468 = vsel %vm2461, %v2403, %v1551
    %v2469 = vsel %vm2461, %v2404, %v1553
    %v2470 = vsel %vm2461, %v2405, %v1555
    %v2471 = vsel %vm2461, %v2406, %v1557
    %v2472 = vsel %vm2461, %v2407, %v1559
    %v2473 = vsel %vm2461, %v2408, %v1561
    %v2474 = vsel %vm2461, %v2409, %v1563
    %v2475 = vsel %vm2461, %v2410, %v1565
    %v2476 = vsel %vm2461, %v2411, %v1567
    %v2477 = vsel %vm2461, %v2412, %v1569
    %v2478 = vsel %vm2461, %v2413, %v1571
    %v2479 = vsel %vm2461, %v2414, %v1573
    %v2480 = vsel %vm2461, %v2415, %v1575
    %v2481 = vsel %vm2461, %v2416, %v1577
    %v2482 = vsel %vm2461, %v2417, %v1579
    %v2483 = vsel %vm2461, %v2418, %v1581
    %v2484 = vsel %vm2461, %v2419, %v1583
    %v2485 = vsel %vm2461, %v2420, %v1585
    %v2486 = vsel %vm2461, %v2421, %v1587
    %v2487 = vsel %vm2461, %v2422, %v1589
    %v2488 = vsel %vm2461, %v2423, %v1591
    %v2489 = vsel %vm2461, %v2424, %v1593
    %v2490 = vsel %vm2461, %v2425, %v1595
    %v2491 = vsel %vm2461, %v2426, %v1597
    %v2492 = vsel %vm2461, %v2427, %v1599
    %v2493 = vsel %vm2461, %v2428, %v1601
    %v2494 = vsel %vm2461, %v2429, %v1603
    %v2495 = vsel %vm2461, %v2430, %v1605
    %v2496 = vsel %vm2461, %v2431, %v1607
    %v2497 = vsel %vm2461, %v2432, %v1609
    %v2498 = vsel %vm2461, %v2433, %v1611
    %v2499 = vsel %vm2461, %v2434, %v1613
    %v2500 = vsel %vm2461, %v2435, %v1615
    %v2501 = vsel %vm2461, %v2436, %v1617
    %v2502 = vsel %vm2461, %v2437, %v1619
    %v2503 = vsel %vm2461, %v2438, %v1621
    %v2504 = vsel %vm2461, %v2439, %v1623
    %v2505 = vsel %vm2461, %v2440, %v1625
    %v2506 = vsel %vm2461, %v2441, %v1627
    %v2507 = vsel %vm2461, %v2442, %v1629
    %v2508 = vsel %vm2461, %v2443, %v1631
    %v2509 = vsel %vm2461, %v2444, %v1633
    %v2510 = vsel %vm2461, %v2445, %v1635
    %v2511 = vsel %vm2461, %v2446, %v1637
    %v2512 = vsel %vm2461, %v2447, %v1639
    %v2513 = vsel %vm2461, %v2448, %v1641
    %v2514 = vsel %vm2461, %v2449, %v1643
    %v2515 = vsel %vm2461, %v2450, %v1645
    %v2516 = vsel %vm2461, %v2451, %v1647
    %v2517 = vsel %vm2461, %v2452, %v1649
    %v2518 = vsel %vm2461, %v2453, %v1651
    %v2519 = vsel %vm2461, %v2454, %v1653
    %v2520 = vsel %vm2461, %v2455, %v1655
    %v2521 = vsel %vm2461, %v2456, %v1657
    %v2522 = vsel %vm2461, %v2457, %v1659
    %v2523 = vsel %vm2461, %v2458, %v1661
    %v2524 = vsel %vm2461, %v2459, %v1663
    %v2525 = vsel %vm2461, %v2460, %v1665
    %vm2526 = vcmask 228352
    %v2527 = vsel %vm2526, %v2462, %v1743
    %v2528 = vsel %vm2526, %v2463, %v1745
    %v2529 = vsel %vm2526, %v2464, %v1747
    %v2530 = vsel %vm2526, %v2465, %v1749
    %v2531 = vsel %vm2526, %v2466, %v1751
    %v2532 = vsel %vm2526, %v2467, %v1753
    %v2533 = vsel %vm2526, %v2468, %v1755
    %v2534 = vsel %vm2526, %v2469, %v1757
    %v2535 = vsel %vm2526, %v2470, %v1759
    %v2536 = vsel %vm2526, %v2471, %v1761
    %v2537 = vsel %vm2526, %v2472, %v1763
    %v2538 = vsel %vm2526, %v2473, %v1765
    %v2539 = vsel %vm2526, %v2474, %v1767
    %v2540 = vsel %vm2526, %v2475, %v1769
    %v2541 = vsel %vm2526, %v2476, %v1771
    %v2542 = vsel %vm2526, %v2477, %v1773
    %v2543 = vsel %vm2526, %v2478, %v1775
    %v2544 = vsel %vm2526, %v2479, %v1777
    %v2545 = vsel %vm2526, %v2480, %v1779
    %v2546 = vsel %vm2526, %v2481, %v1781
    %v2547 = vsel %vm2526, %v2482, %v1783
    %v2548 = vsel %vm2526, %v2483, %v1785
    %v2549 = vsel %vm2526, %v2484, %v1787
    %v2550 = vsel %vm2526, %v2485, %v1789
    %v2551 = vsel %vm2526, %v2486, %v1791
    %v2552 = vsel %vm2526, %v2487, %v1793
    %v2553 = vsel %vm2526, %v2488, %v1795
    %v2554 = vsel %vm2526, %v2489, %v1797
    %v2555 = vsel %vm2526, %v2490, %v1799
    %v2556 = vsel %vm2526, %v2491, %v1801
    %v2557 = vsel %vm2526, %v2492, %v1803
    %v2558 = vsel %vm2526, %v2493, %v1805
    %v2559 = vsel %vm2526, %v2494, %v1807
    %v2560 = vsel %vm2526, %v2495, %v1809
    %v2561 = vsel %vm2526, %v2496, %v1811
    %v2562 = vsel %vm2526, %v2497, %v1813
    %v2563 = vsel %vm2526, %v2498, %v1815
    %v2564 = vsel %vm2526, %v2499, %v1817
    %v2565 = vsel %vm2526, %v2500, %v1819
    %v2566 = vsel %vm2526, %v2501, %v1821
    %v2567 = vsel %vm2526, %v2502, %v1823
    %v2568 = vsel %vm2526, %v2503, %v1825
    %v2569 = vsel %vm2526, %v2504, %v1827
    %v2570 = vsel %vm2526, %v2505, %v1829
    %v2571 = vsel %vm2526, %v2506, %v1831
    %v2572 = vsel %vm2526, %v2507, %v1833
    %v2573 = vsel %vm2526, %v2508, %v1835
    %v2574 = vsel %vm2526, %v2509, %v1837
    %v2575 = vsel %vm2526, %v2510, %v1839
    %v2576 = vsel %vm2526, %v2511, %v1841
    %v2577 = vsel %vm2526, %v2512, %v1843
    %v2578 = vsel %vm2526, %v2513, %v1845
    %v2579 = vsel %vm2526, %v2514, %v1847
    %v2580 = vsel %vm2526, %v2515, %v1849
    %v2581 = vsel %vm2526, %v2516, %v1851
    %v2582 = vsel %vm2526, %v2517, %v1853
    %v2583 = vsel %vm2526, %v2518, %v1855
    %v2584 = vsel %vm2526, %v2519, %v1857
    %v2585 = vsel %vm2526, %v2520, %v1859
    %v2586 = vsel %vm2526, %v2521, %v1861
    %v2587 = vsel %vm2526, %v2522, %v1863
    %v2588 = vsel %vm2526, %v2523, %v1865
    %v2589 = vsel %vm2526, %v2524, %v1867
    %v2590 = vsel %vm2526, %v2525, %v1869
    %vm2591 = vcmask 261120
    %v2592 = vsel %vm2591, %v2527, %v1945
    %v2593 = vsel %vm2591, %v2528, %v1947
    %v2594 = vsel %vm2591, %v2529, %v1949
    %v2595 = vsel %vm2591, %v2530, %v1951
    %v2596 = vsel %vm2591, %v2531, %v1953
    %v2597 = vsel %vm2591, %v2532, %v1955
    %v2598 = vsel %vm2591, %v2533, %v1957
    %v2599 = vsel %vm2591, %v2534, %v1959
    %v2600 = vsel %vm2591, %v2535, %v1961
    %v2601 = vsel %vm2591, %v2536, %v1963
    %v2602 = vsel %vm2591, %v2537, %v1965
    %v2603 = vsel %vm2591, %v2538, %v1967
    %v2604 = vsel %vm2591, %v2539, %v1969
    %v2605 = vsel %vm2591, %v2540, %v1971
    %v2606 = vsel %vm2591, %v2541, %v1973
    %v2607 = vsel %vm2591, %v2542, %v1975
    %v2608 = vsel %vm2591, %v2543, %v1977
    %v2609 = vsel %vm2591, %v2544, %v1979
    %v2610 = vsel %vm2591, %v2545, %v1981
    %v2611 = vsel %vm2591, %v2546, %v1983
    %v2612 = vsel %vm2591, %v2547, %v1985
    %v2613 = vsel %vm2591, %v2548, %v1987
    %v2614 = vsel %vm2591, %v2549, %v1989
    %v2615 = vsel %vm2591, %v2550, %v1991
    %v2616 = vsel %vm2591, %v2551, %v1993
    %v2617 = vsel %vm2591, %v2552, %v1995
    %v2618 = vsel %vm2591, %v2553, %v1997
    %v2619 = vsel %vm2591, %v2554, %v1999
    %v2620 = vsel %vm2591, %v2555, %v2001
    %v2621 = vsel %vm2591, %v2556, %v2003
    %v2622 = vsel %vm2591, %v2557, %v2005
    %v2623 = vsel %vm2591, %v2558, %v2007
    %v2624 = vsel %vm2591, %v2559, %v2009
    %v2625 = vsel %vm2591, %v2560, %v2011
    %v2626 = vsel %vm2591, %v2561, %v2013
    %v2627 = vsel %vm2591, %v2562, %v2015
    %v2628 = vsel %vm2591, %v2563, %v2017
    %v2629 = vsel %vm2591, %v2564, %v2019
    %v2630 = vsel %vm2591, %v2565, %v2021
    %v2631 = vsel %vm2591, %v2566, %v2023
    %v2632 = vsel %vm2591, %v2567, %v2025
    %v2633 = vsel %vm2591, %v2568, %v2027
    %v2634 = vsel %vm2591, %v2569, %v2029
    %v2635 = vsel %vm2591, %v2570, %v2031
    %v2636 = vsel %vm2591, %v2571, %v2033
    %v2637 = vsel %vm2591, %v2572, %v2035
    %v2638 = vsel %vm2591, %v2573, %v2037
    %v2639 = vsel %vm2591, %v2574, %v2039
    %v2640 = vsel %vm2591, %v2575, %v2041
    %v2641 = vsel %vm2591, %v2576, %v2043
    %v2642 = vsel %vm2591, %v2577, %v2045
    %v2643 = vsel %vm2591, %v2578, %v2047
    %v2644 = vsel %vm2591, %v2579, %v2049
    %v2645 = vsel %vm2591, %v2580, %v2051
    %v2646 = vsel %vm2591, %v2581, %v2053
    %v2647 = vsel %vm2591, %v2582, %v2055
    %v2648 = vsel %vm2591, %v2583, %v2057
    %v2649 = vsel %vm2591, %v2584, %v2059
    %v2650 = vsel %vm2591, %v2585, %v2061
    %v2651 = vsel %vm2591, %v2586, %v2063
    %v2652 = vsel %vm2591, %v2587, %v2065
    %v2653 = vsel %vm2591, %v2588, %v2067
    %v2654 = vsel %vm2591, %v2589, %v2069
    %v2655 = vsel %vm2591, %v2590, %v2071
    %v2656 = vpack.c.bf16 %v2593, %v2592
    %v2657 = vpack.c.bf16 %v2595, %v2594
    %v2658 = vpack.c.bf16 %v2597, %v2596
    %v2659 = vpack.c.bf16 %v2599, %v2598
    %v2660 = vpack.c.bf16 %v2601, %v2600
    %v2661 = vpack.c.bf16 %v2603, %v2602
    %v2662 = vpack.c.bf16 %v2605, %v2604
    %v2663 = vpack.c.bf16 %v2607, %v2606
    %v2664 = vpack.c.bf16 %v2609, %v2608
    %v2665 = vpack.c.bf16 %v2611, %v2610
    %v2666 = vpack.c.bf16 %v2613, %v2612
    %v2667 = vpack.c.bf16 %v2615, %v2614
    %v2668 = vpack.c.bf16 %v2617, %v2616
    %v2669 = vpack.c.bf16 %v2619, %v2618
    %v2670 = vpack.c.bf16 %v2621, %v2620
    %v2671 = vpack.c.bf16 %v2623, %v2622
    %v2672 = vpack.c.bf16 %v2625, %v2624
    %v2673 = vpack.c.bf16 %v2627, %v2626
    %v2674 = vpack.c.bf16 %v2629, %v2628
    %v2675 = vpack.c.bf16 %v2631, %v2630
    %v2676 = vpack.c.bf16 %v2633, %v2632
    %v2677 = vpack.c.bf16 %v2635, %v2634
    %v2678 = vpack.c.bf16 %v2637, %v2636
    %v2679 = vpack.c.bf16 %v2639, %v2638
    %v2680 = vpack.c.bf16 %v2641, %v2640
    %v2681 = vpack.c.bf16 %v2643, %v2642
    %v2682 = vpack.c.bf16 %v2645, %v2644
    %v2683 = vpack.c.bf16 %v2647, %v2646
    %v2684 = vpack.c.bf16 %v2649, %v2648
    %v2685 = vpack.c.bf16 %v2651, %v2650
    %v2686 = vpack.c.bf16 %v2653, %v2652
    %v2687 = vpack.c.bf16 %v2655, %v2654
    %v2688 = vld [vmem:[%s1] sm:$0xf]
    %v2689 = vld [vmem:[%s1 + $0x4] sm:$0xf]
    %v2690 = vld [vmem:[%s1 + $0x8] sm:$0xf]
    %v2691 = vld [vmem:[%s1 + $0xc] sm:$0xf]
    %v2692 = vld [vmem:[%s1 + $0x10] sm:$0x3]
    %v2693 = vld [vmem:[%s2] sm:$0x1]
    %v2695 = vlaneseq
    %v2696 = vshrl.u32 %v2695, 7
    %v2697 = vsub.s32 0, %v2696
    %v2698 = vrot.slane %v2693, %v2697
    %v2705 = vunpack.c.l.b16 %v2688
    %v2706 = vunpack.c.l.b16 %v2689
    %v2707 = vunpack.c.l.b16 %v2690
    %v2708 = vunpack.c.l.b16 %v2691
    %v2709 = vunpack.c.l.b16 %v2692
    %v2710 = vpack.c.b16 %v2706, %v2705
    %v2711 = vpack.c.b16 %v2708, %v2707
    %v2712 = vpack.c.b16 %v2709, %v2709
    %vm2715 = vcmask 293888
    %v2717 = vsel %vm2715, %v2656, 0
    %v2720 = vsel %vm2715, %v2657, 0
    %v2723 = vsel %vm2715, %v2658, 0
    %v2726 = vsel %vm2715, %v2659, 0
    %v2729 = vsel %vm2715, %v2660, 0
    %v2732 = vsel %vm2715, %v2661, 0
    %v2735 = vsel %vm2715, %v2662, 0
    %v2738 = vsel %vm2715, %v2663, 0
    %v2741 = vsel %vm2715, %v2664, 0
    %v2744 = vsel %vm2715, %v2665, 0
    %v2747 = vsel %vm2715, %v2666, 0
    %v2750 = vsel %vm2715, %v2667, 0
    %v2753 = vsel %vm2715, %v2668, 0
    %v2756 = vsel %vm2715, %v2669, 0
    %v2759 = vsel %vm2715, %v2670, 0
    %v2762 = vsel %vm2715, %v2671, 0
    %v2765 = vsel %vm2715, %v2672, 0
    %v2768 = vsel %vm2715, %v2673, 0
    %v2771 = vsel %vm2715, %v2674, 0
    %v2774 = vsel %vm2715, %v2675, 0
    %v2777 = vsel %vm2715, %v2676, 0
    %v2780 = vsel %vm2715, %v2677, 0
    %v2783 = vsel %vm2715, %v2678, 0
    %v2786 = vsel %vm2715, %v2679, 0
    %v2789 = vsel %vm2715, %v2680, 0
    %v2792 = vsel %vm2715, %v2681, 0
    %v2795 = vsel %vm2715, %v2682, 0
    %v2798 = vsel %vm2715, %v2683, 0
    %v2801 = vsel %vm2715, %v2684, 0
    %v2804 = vsel %vm2715, %v2685, 0
    %v2807 = vsel %vm2715, %v2686, 0
    %v2810 = vsel %vm2715, %v2687, 0
    %vm2812 = vcmask 1041408
    %v2814 = vsel %vm2812, %v2712, 0
    %2816 = vmatprep.subr.bf16.mxu0 0
    %2817 = vmatpush1.bf16.msra.mxu0 %v2710
    %2818 = vmatprep.subr.bf16.mxu0 0
    %2819 = vmatpush1.bf16.msra.mxu0 %v2711
    %2820 = vmatprep.subr.bf16.mxu0 0
    %2821 = vmatpush1.bf16.msra.mxu0 %v2814
    %2822 = vmatprep.subr.bf16.mxu0 0
    %2823 = vmatpush1.bf16.msra.mxu0 0
    %2824 = vmatprep.subr.bf16.mxu0 0
    %2825 = vmatpush1.bf16.msra.mxu0 0
    %2826 = vmatprep.subr.bf16.mxu0 0
    %2827 = vmatpush1.bf16.msra.mxu0 0
    %2828 = vmatprep.subr.bf16.mxu0 0
    %2829 = vmatpush1.bf16.msra.mxu0 0
    %2830 = vmatprep.subr.bf16.mxu0 0
    %2831 = vmatpush1.bf16.msra.mxu0 0
    %2832 = vmatprep.subr.bf16.mxu0 0
    %2833 = vmatpush1.bf16.msra.mxu0 0
    %2834 = vmatprep.subr.bf16.mxu0 0
    %2835 = vmatpush1.bf16.msra.mxu0 0
    %2836 = vmatprep.subr.bf16.mxu0 0
    %2837 = vmatpush1.bf16.msra.mxu0 0
    %2838 = vmatprep.subr.bf16.mxu0 0
    %2839 = vmatpush1.bf16.msra.mxu0 0
    %2840 = vmatprep.subr.bf16.mxu0 0
    %2841 = vmatpush1.bf16.msra.mxu0 0
    %2842 = vmatprep.subr.bf16.mxu0 0
    %2843 = vmatpush1.bf16.msra.mxu0 0
    %2844 = vmatprep.subr.bf16.mxu0 0
    %2845 = vmatpush1.bf16.msra.mxu0 0
    %2846 = vmatprep.subr.bf16.mxu0 0
    %2847 = vmatpush1.bf16.msra.mxu0 0
    %2848 = vmatprep.mubr.bf16.mxu0 0
    %2849 = vmatmul.mubr.bf16.gmra.mrb[0].mxu0 %v2717
    %v2850 = vpop.f32.mrb[0].mxu0
    %v2851 = vadd.f32 %v2698, %v2850
    %v2852 = vpop.f32.mrb[0].mxu0
    %v2853 = vpop.f32.mrb[0].mxu0
    %v2854 = vadd.f32 %v2698, %v2853
    %v2855 = vpop.f32.mrb[0].mxu0
    %2856 = vmatprep.mubr.bf16.mxu0 0
    %2857 = vmatmul.mubr.bf16.gmra.mrb[0].mxu0 %v2720
    %v2858 = vpop.f32.mrb[0].mxu0
    %v2859 = vadd.f32 %v2698, %v2858
    %v2860 = vpop.f32.mrb[0].mxu0
    %v2861 = vpop.f32.mrb[0].mxu0
    %v2862 = vadd.f32 %v2698, %v2861
    %v2863 = vpop.f32.mrb[0].mxu0
    %2864 = vmatprep.mubr.bf16.mxu0 0
    %2865 = vmatmul.mubr.bf16.gmra.mrb[0].mxu0 %v2723
    %v2866 = vpop.f32.mrb[0].mxu0
    %v2867 = vadd.f32 %v2698, %v2866
    %v2868 = vpop.f32.mrb[0].mxu0
    %v2869 = vpop.f32.mrb[0].mxu0
    %v2870 = vadd.f32 %v2698, %v2869
    %v2871 = vpop.f32.mrb[0].mxu0
    %2872 = vmatprep.mubr.bf16.mxu0 0
    %2873 = vmatmul.mubr.bf16.gmra.mrb[0].mxu0 %v2726
    %v2874 = vpop.f32.mrb[0].mxu0
    %v2875 = vadd.f32 %v2698, %v2874
    %v2876 = vpop.f32.mrb[0].mxu0
    %v2877 = vpop.f32.mrb[0].mxu0
    %v2878 = vadd.f32 %v2698, %v2877
    %v2879 = vpop.f32.mrb[0].mxu0
    %2880 = vmatprep.mubr.bf16.mxu0 0
    %2881 = vmatmul.mubr.bf16.gmra.mrb[0].mxu0 %v2729
    %v2882 = vpop.f32.mrb[0].mxu0
    %v2883 = vadd.f32 %v2698, %v2882
    %v2884 = vpop.f32.mrb[0].mxu0
    %v2885 = vpop.f32.mrb[0].mxu0
    %v2886 = vadd.f32 %v2698, %v2885
    %v2887 = vpop.f32.mrb[0].mxu0
    %2888 = vmatprep.mubr.bf16.mxu0 0
    %2889 = vmatmul.mubr.bf16.gmra.mrb[0].mxu0 %v2732
    %v2890 = vpop.f32.mrb[0].mxu0
    %v2891 = vadd.f32 %v2698, %v2890
    %v2892 = vpop.f32.mrb[0].mxu0
    %v2893 = vpop.f32.mrb[0].mxu0
    %v2894 = vadd.f32 %v2698, %v2893
    %v2895 = vpop.f32.mrb[0].mxu0
    %2896 = vmatprep.mubr.bf16.mxu0 0
    %2897 = vmatmul.mubr.bf16.gmra.mrb[0].mxu0 %v2735
    %v2898 = vpop.f32.mrb[0].mxu0
    %v2899 = vadd.f32 %v2698, %v2898
    %v2900 = vpop.f32.mrb[0].mxu0
    %v2901 = vpop.f32.mrb[0].mxu0
    %v2902 = vadd.f32 %v2698, %v2901
    %v2903 = vpop.f32.mrb[0].mxu0
    %2904 = vmatprep.mubr.bf16.mxu0 0
    %2905 = vmatmul.mubr.bf16.gmra.mrb[0].mxu0 %v2738
    %v2906 = vpop.f32.mrb[0].mxu0
    %v2907 = vadd.f32 %v2698, %v2906
    %v2908 = vpop.f32.mrb[0].mxu0
    %v2909 = vpop.f32.mrb[0].mxu0
    %v2910 = vadd.f32 %v2698, %v2909
    %v2911 = vpop.f32.mrb[0].mxu0
    %2912 = vmatprep.mubr.bf16.mxu0 0
    %2913 = vmatmul.mubr.bf16.gmra.mrb[0].mxu0 %v2741
    %v2914 = vpop.f32.mrb[0].mxu0
    %v2915 = vadd.f32 %v2698, %v2914
    %v2916 = vpop.f32.mrb[0].mxu0
    %v2917 = vpop.f32.mrb[0].mxu0
    %v2918 = vadd.f32 %v2698, %v2917
    %v2919 = vpop.f32.mrb[0].mxu0
    %2920 = vmatprep.mubr.bf16.mxu0 0
    %2921 = vmatmul.mubr.bf16.gmra.mrb[0].mxu0 %v2744
    %v2922 = vpop.f32.mrb[0].mxu0
    %v2923 = vadd.f32 %v2698, %v2922
    %v2924 = vpop.f32.mrb[0].mxu0
    %v2925 = vpop.f32.mrb[0].mxu0
    %v2926 = vadd.f32 %v2698, %v2925
    %v2927 = vpop.f32.mrb[0].mxu0
    %2928 = vmatprep.mubr.bf16.mxu0 0
    %2929 = vmatmul.mubr.bf16.gmra.mrb[0].mxu0 %v2747
    %v2930 = vpop.f32.mrb[0].mxu0
    %v2931 = vadd.f32 %v2698, %v2930
    %v2932 = vpop.f32.mrb[0].mxu0
    %v2933 = vpop.f32.mrb[0].mxu0
    %v2934 = vadd.f32 %v2698, %v2933
    %v2935 = vpop.f32.mrb[0].mxu0
    %2936 = vmatprep.mubr.bf16.mxu0 0
    %2937 = vmatmul.mubr.bf16.gmra.mrb[0].mxu0 %v2750
    %v2938 = vpop.f32.mrb[0].mxu0
    %v2939 = vadd.f32 %v2698, %v2938
    %v2940 = vpop.f32.mrb[0].mxu0
    %v2941 = vpop.f32.mrb[0].mxu0
    %v2942 = vadd.f32 %v2698, %v2941
    %v2943 = vpop.f32.mrb[0].mxu0
    %2944 = vmatprep.mubr.bf16.mxu0 0
    %2945 = vmatmul.mubr.bf16.gmra.mrb[0].mxu0 %v2753
    %v2946 = vpop.f32.mrb[0].mxu0
    %v2947 = vadd.f32 %v2698, %v2946
    %v2948 = vpop.f32.mrb[0].mxu0
    %v2949 = vpop.f32.mrb[0].mxu0
    %v2950 = vadd.f32 %v2698, %v2949
    %v2951 = vpop.f32.mrb[0].mxu0
    %2952 = vmatprep.mubr.bf16.mxu0 0
    %2953 = vmatmul.mubr.bf16.gmra.mrb[0].mxu0 %v2756
    %v2954 = vpop.f32.mrb[0].mxu0
    %v2955 = vadd.f32 %v2698, %v2954
    %v2956 = vpop.f32.mrb[0].mxu0
    %v2957 = vpop.f32.mrb[0].mxu0
    %v2958 = vadd.f32 %v2698, %v2957
    %v2959 = vpop.f32.mrb[0].mxu0
    %2960 = vmatprep.mubr.bf16.mxu0 0
    %2961 = vmatmul.mubr.bf16.gmra.mrb[0].mxu0 %v2759
    %v2962 = vpop.f32.mrb[0].mxu0
    %v2963 = vadd.f32 %v2698, %v2962
    %v2964 = vpop.f32.mrb[0].mxu0
    %v2965 = vpop.f32.mrb[0].mxu0
    %v2966 = vadd.f32 %v2698, %v2965
    %v2967 = vpop.f32.mrb[0].mxu0
    %2968 = vmatprep.mubr.bf16.mxu0 0
    %2969 = vmatmul.mubr.bf16.gmra.mrb[0].mxu0 %v2762
    %v2970 = vpop.f32.mrb[0].mxu0
    %v2971 = vadd.f32 %v2698, %v2970
    %v2972 = vpop.f32.mrb[0].mxu0
    %v2973 = vpop.f32.mrb[0].mxu0
    %v2974 = vadd.f32 %v2698, %v2973
    %v2975 = vpop.f32.mrb[0].mxu0
    %2976 = vmatprep.mubr.bf16.mxu0 0
    %2977 = vmatmul.mubr.bf16.gmra.mrb[0].mxu0 %v2765
    %v2978 = vpop.f32.mrb[0].mxu0
    %v2979 = vadd.f32 %v2698, %v2978
    %v2980 = vpop.f32.mrb[0].mxu0
    %v2981 = vpop.f32.mrb[0].mxu0
    %v2982 = vadd.f32 %v2698, %v2981
    %v2983 = vpop.f32.mrb[0].mxu0
    %2984 = vmatprep.mubr.bf16.mxu0 0
    %2985 = vmatmul.mubr.bf16.gmra.mrb[0].mxu0 %v2768
    %v2986 = vpop.f32.mrb[0].mxu0
    %v2987 = vadd.f32 %v2698, %v2986
    %v2988 = vpop.f32.mrb[0].mxu0
    %v2989 = vpop.f32.mrb[0].mxu0
    %v2990 = vadd.f32 %v2698, %v2989
    %v2991 = vpop.f32.mrb[0].mxu0
    %2992 = vmatprep.mubr.bf16.mxu0 0
    %2993 = vmatmul.mubr.bf16.gmra.mrb[0].mxu0 %v2771
    %v2994 = vpop.f32.mrb[0].mxu0
    %v2995 = vadd.f32 %v2698, %v2994
    %v2996 = vpop.f32.mrb[0].mxu0
    %v2997 = vpop.f32.mrb[0].mxu0
    %v2998 = vadd.f32 %v2698, %v2997
    %v2999 = vpop.f32.mrb[0].mxu0
    %3000 = vmatprep.mubr.bf16.mxu0 0
    %3001 = vmatmul.mubr.bf16.gmra.mrb[0].mxu0 %v2774
    %v3002 = vpop.f32.mrb[0].mxu0
    %v3003 = vadd.f32 %v2698, %v3002
    %v3004 = vpop.f32.mrb[0].mxu0
    %v3005 = vpop.f32.mrb[0].mxu0
    %v3006 = vadd.f32 %v2698, %v3005
    %v3007 = vpop.f32.mrb[0].mxu0
    %3008 = vmatprep.mubr.bf16.mxu0 0
    %3009 = vmatmul.mubr.bf16.gmra.mrb[0].mxu0 %v2777
    %v3010 = vpop.f32.mrb[0].mxu0
    %v3011 = vadd.f32 %v2698, %v3010
    %v3012 = vpop.f32.mrb[0].mxu0
    %v3013 = vpop.f32.mrb[0].mxu0
    %v3014 = vadd.f32 %v2698, %v3013
    %v3015 = vpop.f32.mrb[0].mxu0
    %3016 = vmatprep.mubr.bf16.mxu0 0
    %3017 = vmatmul.mubr.bf16.gmra.mrb[0].mxu0 %v2780
    %v3018 = vpop.f32.mrb[0].mxu0
    %v3019 = vadd.f32 %v2698, %v3018
    %v3020 = vpop.f32.mrb[0].mxu0
    %v3021 = vpop.f32.mrb[0].mxu0
    %v3022 = vadd.f32 %v2698, %v3021
    %v3023 = vpop.f32.mrb[0].mxu0
    %3024 = vmatprep.mubr.bf16.mxu0 0
    %3025 = vmatmul.mubr.bf16.gmra.mrb[0].mxu0 %v2783
    %v3026 = vpop.f32.mrb[0].mxu0
    %v3027 = vadd.f32 %v2698, %v3026
    %v3028 = vpop.f32.mrb[0].mxu0
    %v3029 = vpop.f32.mrb[0].mxu0
    %v3030 = vadd.f32 %v2698, %v3029
    %v3031 = vpop.f32.mrb[0].mxu0
    %3032 = vmatprep.mubr.bf16.mxu0 0
    %3033 = vmatmul.mubr.bf16.gmra.mrb[0].mxu0 %v2786
    %v3034 = vpop.f32.mrb[0].mxu0
    %v3035 = vadd.f32 %v2698, %v3034
    %v3036 = vpop.f32.mrb[0].mxu0
    %v3037 = vpop.f32.mrb[0].mxu0
    %v3038 = vadd.f32 %v2698, %v3037
    %v3039 = vpop.f32.mrb[0].mxu0
    %3040 = vmatprep.mubr.bf16.mxu0 0
    %3041 = vmatmul.mubr.bf16.gmra.mrb[0].mxu0 %v2789
    %v3042 = vpop.f32.mrb[0].mxu0
    %v3043 = vadd.f32 %v2698, %v3042
    %v3044 = vpop.f32.mrb[0].mxu0
    %v3045 = vpop.f32.mrb[0].mxu0
    %v3046 = vadd.f32 %v2698, %v3045
    %v3047 = vpop.f32.mrb[0].mxu0
    %3048 = vmatprep.mubr.bf16.mxu0 0
    %3049 = vmatmul.mubr.bf16.gmra.mrb[0].mxu0 %v2792
    %v3050 = vpop.f32.mrb[0].mxu0
    %v3051 = vadd.f32 %v2698, %v3050
    %v3052 = vpop.f32.mrb[0].mxu0
    %v3053 = vpop.f32.mrb[0].mxu0
    %v3054 = vadd.f32 %v2698, %v3053
    %v3055 = vpop.f32.mrb[0].mxu0
    %3056 = vmatprep.mubr.bf16.mxu0 0
    %3057 = vmatmul.mubr.bf16.gmra.mrb[0].mxu0 %v2795
    %v3058 = vpop.f32.mrb[0].mxu0
    %v3059 = vadd.f32 %v2698, %v3058
    %v3060 = vpop.f32.mrb[0].mxu0
    %v3061 = vpop.f32.mrb[0].mxu0
    %v3062 = vadd.f32 %v2698, %v3061
    %v3063 = vpop.f32.mrb[0].mxu0
    %3064 = vmatprep.mubr.bf16.mxu0 0
    %3065 = vmatmul.mubr.bf16.gmra.mrb[0].mxu0 %v2798
    %v3066 = vpop.f32.mrb[0].mxu0
    %v3067 = vadd.f32 %v2698, %v3066
    %v3068 = vpop.f32.mrb[0].mxu0
    %v3069 = vpop.f32.mrb[0].mxu0
    %v3070 = vadd.f32 %v2698, %v3069
    %v3071 = vpop.f32.mrb[0].mxu0
    %3072 = vmatprep.mubr.bf16.mxu0 0
    %3073 = vmatmul.mubr.bf16.gmra.mrb[0].mxu0 %v2801
    %v3074 = vpop.f32.mrb[0].mxu0
    %v3075 = vadd.f32 %v2698, %v3074
    %v3076 = vpop.f32.mrb[0].mxu0
    %v3077 = vpop.f32.mrb[0].mxu0
    %v3078 = vadd.f32 %v2698, %v3077
    %v3079 = vpop.f32.mrb[0].mxu0
    %3080 = vmatprep.mubr.bf16.mxu0 0
    %3081 = vmatmul.mubr.bf16.gmra.mrb[0].mxu0 %v2804
    %v3082 = vpop.f32.mrb[0].mxu0
    %v3083 = vadd.f32 %v2698, %v3082
    %v3084 = vpop.f32.mrb[0].mxu0
    %v3085 = vpop.f32.mrb[0].mxu0
    %v3086 = vadd.f32 %v2698, %v3085
    %v3087 = vpop.f32.mrb[0].mxu0
    %3088 = vmatprep.mubr.bf16.mxu0 0
    %3089 = vmatmul.mubr.bf16.gmra.mrb[0].mxu0 %v2807
    %v3090 = vpop.f32.mrb[0].mxu0
    %v3091 = vadd.f32 %v2698, %v3090
    %v3092 = vpop.f32.mrb[0].mxu0
    %v3093 = vpop.f32.mrb[0].mxu0
    %v3094 = vadd.f32 %v2698, %v3093
    %v3095 = vpop.f32.mrb[0].mxu0
    %3096 = vmatprep.mubr.bf16.mxu0 0
    %3097 = vmatmul.mubr.bf16.gmra.mrb[0].mxu0 %v2810
    %v3098 = vpop.f32.mrb[0].mxu0
    %v3099 = vadd.f32 %v2698, %v3098
    %v3100 = vpop.f32.mrb[0].mxu0
    %v3101 = vpop.f32.mrb[0].mxu0
    %v3102 = vadd.f32 %v2698, %v3101
    %v3103 = vpop.f32.mrb[0].mxu0
    %3104 = vdwg.mxu0
    %v3105 = vmax.f32 %v2851, 0.0
    %v3106 = vmax.f32 %v2854, 0.0
    %v3107 = vmax.f32 %v2859, 0.0
    %v3108 = vmax.f32 %v2862, 0.0
    %v3109 = vmax.f32 %v2867, 0.0
    %v3110 = vmax.f32 %v2870, 0.0
    %v3111 = vmax.f32 %v2875, 0.0
    %v3112 = vmax.f32 %v2878, 0.0
    %v3113 = vmax.f32 %v2883, 0.0
    %v3114 = vmax.f32 %v2886, 0.0
    %v3115 = vmax.f32 %v2891, 0.0
    %v3116 = vmax.f32 %v2894, 0.0
    %v3117 = vmax.f32 %v2899, 0.0
    %v3118 = vmax.f32 %v2902, 0.0
    %v3119 = vmax.f32 %v2907, 0.0
    %v3120 = vmax.f32 %v2910, 0.0
    %v3121 = vmax.f32 %v2915, 0.0
    %v3122 = vmax.f32 %v2918, 0.0
    %v3123 = vmax.f32 %v2923, 0.0
    %v3124 = vmax.f32 %v2926, 0.0
    %v3125 = vmax.f32 %v2931, 0.0
    %v3126 = vmax.f32 %v2934, 0.0
    %v3127 = vmax.f32 %v2939, 0.0
    %v3128 = vmax.f32 %v2942, 0.0
    %v3129 = vmax.f32 %v2947, 0.0
    %v3130 = vmax.f32 %v2950, 0.0
    %v3131 = vmax.f32 %v2955, 0.0
    %v3132 = vmax.f32 %v2958, 0.0
    %v3133 = vmax.f32 %v2963, 0.0
    %v3134 = vmax.f32 %v2966, 0.0
    %v3135 = vmax.f32 %v2971, 0.0
    %v3136 = vmax.f32 %v2974, 0.0
    %v3137 = vmax.f32 %v2979, 0.0
    %v3138 = vmax.f32 %v2982, 0.0
    %v3139 = vmax.f32 %v2987, 0.0
    %v3140 = vmax.f32 %v2990, 0.0
    %v3141 = vmax.f32 %v2995, 0.0
    %v3142 = vmax.f32 %v2998, 0.0
    %v3143 = vmax.f32 %v3003, 0.0
    %v3144 = vmax.f32 %v3006, 0.0
    %v3145 = vmax.f32 %v3011, 0.0
    %v3146 = vmax.f32 %v3014, 0.0
    %v3147 = vmax.f32 %v3019, 0.0
    %v3148 = vmax.f32 %v3022, 0.0
    %v3149 = vmax.f32 %v3027, 0.0
    %v3150 = vmax.f32 %v3030, 0.0
    %v3151 = vmax.f32 %v3035, 0.0
    %v3152 = vmax.f32 %v3038, 0.0
    %v3153 = vmax.f32 %v3043, 0.0
    %v3154 = vmax.f32 %v3046, 0.0
    %v3155 = vmax.f32 %v3051, 0.0
    %v3156 = vmax.f32 %v3054, 0.0
    %v3157 = vmax.f32 %v3059, 0.0
    %v3158 = vmax.f32 %v3062, 0.0
    %v3159 = vmax.f32 %v3067, 0.0
    %v3160 = vmax.f32 %v3070, 0.0
    %v3161 = vmax.f32 %v3075, 0.0
    %v3162 = vmax.f32 %v3078, 0.0
    %v3163 = vmax.f32 %v3083, 0.0
    %v3164 = vmax.f32 %v3086, 0.0
    %v3165 = vmax.f32 %v3091, 0.0
    %v3166 = vmax.f32 %v3094, 0.0
    %v3167 = vmax.f32 %v3099, 0.0
    %v3168 = vmax.f32 %v3102, 0.0
    %v3169 = vsel %vm2591, %v3105, 0.0
    %v3170 = vsel %vm2591, %v3106, 0.0
    %v3171 = vadd.f32 %v3169, %v3170
    %v3172 = vsel %vm2591, %v3107, 0.0
    %v3173 = vadd.f32 %v3171, %v3172
    %v3174 = vsel %vm2591, %v3108, 0.0
    %v3175 = vadd.f32 %v3173, %v3174
    %v3176 = vsel %vm2591, %v3109, 0.0
    %v3177 = vadd.f32 %v3175, %v3176
    %v3178 = vsel %vm2591, %v3110, 0.0
    %v3179 = vadd.f32 %v3177, %v3178
    %v3180 = vsel %vm2591, %v3111, 0.0
    %v3181 = vadd.f32 %v3179, %v3180
    %v3182 = vsel %vm2591, %v3112, 0.0
    %v3183 = vadd.f32 %v3181, %v3182
    %v3184 = vsel %vm2591, %v3113, 0.0
    %v3185 = vadd.f32 %v3183, %v3184
    %v3186 = vsel %vm2591, %v3114, 0.0
    %v3187 = vadd.f32 %v3185, %v3186
    %v3188 = vsel %vm2591, %v3115, 0.0
    %v3189 = vadd.f32 %v3187, %v3188
    %v3190 = vsel %vm2591, %v3116, 0.0
    %v3191 = vadd.f32 %v3189, %v3190
    %v3192 = vsel %vm2591, %v3117, 0.0
    %v3193 = vadd.f32 %v3191, %v3192
    %v3194 = vsel %vm2591, %v3118, 0.0
    %v3195 = vadd.f32 %v3193, %v3194
    %v3196 = vsel %vm2591, %v3119, 0.0
    %v3197 = vadd.f32 %v3195, %v3196
    %v3198 = vsel %vm2591, %v3120, 0.0
    %v3199 = vadd.f32 %v3197, %v3198
    %v3200 = vsel %vm2591, %v3121, 0.0
    %v3201 = vadd.f32 %v3199, %v3200
    %v3202 = vsel %vm2591, %v3122, 0.0
    %v3203 = vadd.f32 %v3201, %v3202
    %v3204 = vsel %vm2591, %v3123, 0.0
    %v3205 = vadd.f32 %v3203, %v3204
    %v3206 = vsel %vm2591, %v3124, 0.0
    %v3207 = vadd.f32 %v3205, %v3206
    %v3208 = vsel %vm2591, %v3125, 0.0
    %v3209 = vadd.f32 %v3207, %v3208
    %v3210 = vsel %vm2591, %v3126, 0.0
    %v3211 = vadd.f32 %v3209, %v3210
    %v3212 = vsel %vm2591, %v3127, 0.0
    %v3213 = vadd.f32 %v3211, %v3212
    %v3214 = vsel %vm2591, %v3128, 0.0
    %v3215 = vadd.f32 %v3213, %v3214
    %v3216 = vsel %vm2591, %v3129, 0.0
    %v3217 = vadd.f32 %v3215, %v3216
    %v3218 = vsel %vm2591, %v3130, 0.0
    %v3219 = vadd.f32 %v3217, %v3218
    %v3220 = vsel %vm2591, %v3131, 0.0
    %v3221 = vadd.f32 %v3219, %v3220
    %v3222 = vsel %vm2591, %v3132, 0.0
    %v3223 = vadd.f32 %v3221, %v3222
    %v3224 = vsel %vm2591, %v3133, 0.0
    %v3225 = vadd.f32 %v3223, %v3224
    %v3226 = vsel %vm2591, %v3134, 0.0
    %v3227 = vadd.f32 %v3225, %v3226
    %v3228 = vsel %vm2591, %v3135, 0.0
    %v3229 = vadd.f32 %v3227, %v3228
    %v3230 = vsel %vm2591, %v3136, 0.0
    %v3231 = vadd.f32 %v3229, %v3230
    %v3232 = vrot.slane %v3231, 4
    %v3233 = vadd.f32 %v3231, %v3232
    %v3234 = vrot.slane %v3233, 2
    %v3235 = vadd.f32 %v3233, %v3234
    %v3236 = vrot.slane %v3235, 1
    %v3237 = vadd.f32 %v3235, %v3236
    %v3238 = vsel %vm2591, %v3137, 0.0
    %v3239 = vsel %vm2591, %v3138, 0.0
    %v3240 = vadd.f32 %v3238, %v3239
    %v3241 = vsel %vm2591, %v3139, 0.0
    %v3242 = vadd.f32 %v3240, %v3241
    %v3243 = vsel %vm2591, %v3140, 0.0
    %v3244 = vadd.f32 %v3242, %v3243
    %v3245 = vsel %vm2591, %v3141, 0.0
    %v3246 = vadd.f32 %v3244, %v3245
    %v3247 = vsel %vm2591, %v3142, 0.0
    %v3248 = vadd.f32 %v3246, %v3247
    %v3249 = vsel %vm2591, %v3143, 0.0
    %v3250 = vadd.f32 %v3248, %v3249
    %v3251 = vsel %vm2591, %v3144, 0.0
    %v3252 = vadd.f32 %v3250, %v3251
    %v3253 = vsel %vm2591, %v3145, 0.0
    %v3254 = vadd.f32 %v3252, %v3253
    %v3255 = vsel %vm2591, %v3146, 0.0
    %v3256 = vadd.f32 %v3254, %v3255
    %v3257 = vsel %vm2591, %v3147, 0.0
    %v3258 = vadd.f32 %v3256, %v3257
    %v3259 = vsel %vm2591, %v3148, 0.0
    %v3260 = vadd.f32 %v3258, %v3259
    %v3261 = vsel %vm2591, %v3149, 0.0
    %v3262 = vadd.f32 %v3260, %v3261
    %v3263 = vsel %vm2591, %v3150, 0.0
    %v3264 = vadd.f32 %v3262, %v3263
    %v3265 = vsel %vm2591, %v3151, 0.0
    %v3266 = vadd.f32 %v3264, %v3265
    %v3267 = vsel %vm2591, %v3152, 0.0
    %v3268 = vadd.f32 %v3266, %v3267
    %v3269 = vsel %vm2591, %v3153, 0.0
    %v3270 = vadd.f32 %v3268, %v3269
    %v3271 = vsel %vm2591, %v3154, 0.0
    %v3272 = vadd.f32 %v3270, %v3271
    %v3273 = vsel %vm2591, %v3155, 0.0
    %v3274 = vadd.f32 %v3272, %v3273
    %v3275 = vsel %vm2591, %v3156, 0.0
    %v3276 = vadd.f32 %v3274, %v3275
    %v3277 = vsel %vm2591, %v3157, 0.0
    %v3278 = vadd.f32 %v3276, %v3277
    %v3279 = vsel %vm2591, %v3158, 0.0
    %v3280 = vadd.f32 %v3278, %v3279
    %v3281 = vsel %vm2591, %v3159, 0.0
    %v3282 = vadd.f32 %v3280, %v3281
    %v3283 = vsel %vm2591, %v3160, 0.0
    %v3284 = vadd.f32 %v3282, %v3283
    %v3285 = vsel %vm2591, %v3161, 0.0
    %v3286 = vadd.f32 %v3284, %v3285
    %v3287 = vsel %vm2591, %v3162, 0.0
    %v3288 = vadd.f32 %v3286, %v3287
    %v3289 = vsel %vm2591, %v3163, 0.0
    %v3290 = vadd.f32 %v3288, %v3289
    %v3291 = vsel %vm2591, %v3164, 0.0
    %v3292 = vadd.f32 %v3290, %v3291
    %v3293 = vsel %vm2591, %v3165, 0.0
    %v3294 = vadd.f32 %v3292, %v3293
    %v3295 = vsel %vm2591, %v3166, 0.0
    %v3296 = vadd.f32 %v3294, %v3295
    %v3297 = vsel %vm2591, %v3167, 0.0
    %v3298 = vadd.f32 %v3296, %v3297
    %v3299 = vsel %vm2591, %v3168, 0.0
    %v3300 = vadd.f32 %v3298, %v3299
    %v3301 = vrot.slane %v3300, 4
    %v3302 = vadd.f32 %v3300, %v3301
    %v3303 = vrot.slane %v3302, 2
    %v3304 = vadd.f32 %v3302, %v3303
    %v3305 = vrot.slane %v3304, 1
    %v3306 = vadd.f32 %v3304, %v3305
    %v3307 = vpack.c.bf16 %v3237, %v3237
    %v3308 = vpack.c.bf16 %v3306, %v3306
    %v3309 = vld [vmem:[%s3] sm:$0xf]
    %v3310 = vld [vmem:[%s3 + $0x4] sm:$0xf]
    %v3311 = vld [vmem:[%s3 + $0x8] sm:$0xf]
    %v3312 = vld [vmem:[%s3 + $0xc] sm:$0xf]
    %v3313 = vld [vmem:[%s4] sm:$0x1]
    %v3315 = vlaneseq
    %v3316 = vshrl.u32 %v3315, 7
    %v3317 = vsub.s32 0, %v3316
    %v3318 = vrot.slane %v3313, %v3317
    %v3322 = vunpack.c.l.b16 %v3307
    %v3323 = vunpack.c.l.b16 %v3308
    %vm3324 = vcmask 1041409
    %v3325 = vsel %vm3324, %v3323, %v3322
    %v3326 = vpack.c.b16 %v3325, %v3325
    %v3331 = vunpack.c.l.b16 %v3309
    %v3332 = vunpack.c.l.b16 %v3310
    %v3333 = vunpack.c.l.b16 %v3311
    %v3334 = vunpack.c.l.b16 %v3312
    %v3335 = vpack.c.b16 %v3332, %v3331
    %v3336 = vpack.c.b16 %v3334, %v3333
    %v3340 = vsel %vm2591, %v3326, 0
    %3342 = vmatprep.subr.bf16.mxu0 0
    %3343 = vmatpush1.bf16.msra.mxu0 %v3335
    %3344 = vmatprep.subr.bf16.mxu0 0
    %3345 = vmatpush1.bf16.msra.mxu0 %v3336
    %3346 = vmatprep.subr.bf16.mxu0 0
    %3347 = vmatpush1.bf16.msra.mxu0 0
    %3348 = vmatprep.subr.bf16.mxu0 0
    %3349 = vmatpush1.bf16.msra.mxu0 0
    %3350 = vmatprep.subr.bf16.mxu0 0
    %3351 = vmatpush1.bf16.msra.mxu0 0
    %3352 = vmatprep.subr.bf16.mxu0 0
    %3353 = vmatpush1.bf16.msra.mxu0 0
    %3354 = vmatprep.subr.bf16.mxu0 0
    %3355 = vmatpush1.bf16.msra.mxu0 0
    %3356 = vmatprep.subr.bf16.mxu0 0
    %3357 = vmatpush1.bf16.msra.mxu0 0
    %3358 = vmatprep.subr.bf16.mxu0 0
    %3359 = vmatpush1.bf16.msra.mxu0 0
    %3360 = vmatprep.subr.bf16.mxu0 0
    %3361 = vmatpush1.bf16.msra.mxu0 0
    %3362 = vmatprep.subr.bf16.mxu0 0
    %3363 = vmatpush1.bf16.msra.mxu0 0
    %3364 = vmatprep.subr.bf16.mxu0 0
    %3365 = vmatpush1.bf16.msra.mxu0 0
    %3366 = vmatprep.subr.bf16.mxu0 0
    %3367 = vmatpush1.bf16.msra.mxu0 0
    %3368 = vmatprep.subr.bf16.mxu0 0
    %3369 = vmatpush1.bf16.msra.mxu0 0
    %3370 = vmatprep.subr.bf16.mxu0 0
    %3371 = vmatpush1.bf16.msra.mxu0 0
    %3372 = vmatprep.subr.bf16.mxu0 0
    %3373 = vmatpush1.bf16.msra.mxu0 0
    %3374 = vmatprep.mubr.bf16.mxu0 0
    %3375 = vmatmul.mubr.bf16.gmra.mrb[0].mxu0 %v3340
    %v3376 = vpop.f32.mrb[0].mxu0
    %v3377 = vadd.f32 %v3318, %v3376
    %v3378 = vpop.f32.mrb[0].mxu0
    %v3379 = vpop.f32.mrb[0].mxu0
    %v3380 = vpop.f32.mrb[0].mxu0
    %3381 = vdwg.mxu0
    %3382 = vst [vmem:[#allocation2] sm:$0x3] %v3377
    // Predicated region
    $region22: #{patchcure_forward.1} parent=1 // pred_check
      _
    $region23: #{patchcure_forward.1} parent=1 // pred_check_branch
      %3384 = sbr.rel (0) target = $region25
    $region24: #{patchcure_forward.1} parent=1 // pred_region
      %s3386 = ssub.s32 32, 32
      %3387 = vsyncadd [#allocation3], %s3386
      %s3389 = sshll.u32 [#allocation2], 4
      %s3390 = int_to_ptr.vmem [resolvable:$true] %s3389
      %3392 = dma.vmem_to_hbm [thread:$0]  %s3390, 32, %s5, [#allocation3]
    $region25: #{patchcure_forward.1} parent=1 // pred_fallthru
      _
    // Predicated region
    $region26: #{patchcure_forward.1} parent=1 // pred_check
      _
    $region27: #{patchcure_forward.1} parent=1 // pred_check_branch
      %3394 = sbr.rel (0) target = $region29
    $region28: #{patchcure_forward.1} parent=1 // pred_region
      %3395 = dma.done [#allocation3], 32
    $region29: #{patchcure_forward.1} parent=1 // pred_fallthru
      _
    %3396 = vsyncpa [#allocation3], 1

</llo_original>
